<compile_context>
chip_gen: v7x
topology: tpu7x:2x2x1
jax: 0.10.0
libtpu: 0.0.40
codegen_flags: <defaults>
</compile_context>

<pallas_src>
import functools

import jax
import jax.numpy as jnp
import numpy as np
from jax import lax
from jax.experimental import pallas as pl
from jax.experimental.pallas import tpu as pltpu


def _mhsa_kernel(xq_ref, xkv_ref, wq_ref, bq_ref, wk_ref, bk_ref, wv_ref, bv_ref,
                 o_ref, q_sc, m_sc, l_sc, acc_sc,
                 *, n_heads, d_head, compute_dtype):
    ki = pl.program_id(2)

    # ---- init per (b, q_tile): reset online-softmax state, project Q once ----
    @pl.when(ki == 0)
    def _init():
        m_sc[...] = jnp.full(m_sc.shape, -jnp.inf, m_sc.dtype)
        l_sc[...] = jnp.zeros(l_sc.shape, l_sc.dtype)
        acc_sc[...] = jnp.zeros(acc_sc.shape, acc_sc.dtype)
        xq = xq_ref[0].astype(compute_dtype)                        # (TQ, D)
        for h in range(n_heads):                                    # static unroll
            xq_h = xq[:, h * d_head:(h + 1) * d_head]               # (TQ, dh)
            q_h = jnp.dot(xq_h, wq_ref[h],                          # scale folded in W/b
                          preferred_element_type=jnp.float32) + bq_ref[h]
            q_sc[h] = q_h.astype(q_sc.dtype)

    # ---- per KV tile: project K/V for all heads, online-softmax update ----
    xkv = xkv_ref[0].astype(compute_dtype)                          # (TK, D)
    for h in range(n_heads):
        xkv_h = xkv[:, h * d_head:(h + 1) * d_head]                 # (TK, dh)
        k_h = (jnp.dot(xkv_h, wk_ref[h], preferred_element_type=jnp.float32)
               + bk_ref[h]).astype(compute_dtype)
        v_h = (jnp.dot(xkv_h, wv_ref[h], preferred_element_type=jnp.float32)
               + bv_ref[h]).astype(compute_dtype)

        q_h = q_sc[h]                                               # (TQ, dh)
        # q_h @ k_h.T without materializing a transpose (contract dim 1 of both).
        s = lax.dot_general(q_h, k_h, (((1,), (1,)), ((), ())),
                            preferred_element_type=jnp.float32)     # (TQ, TK) f32

        m_prev = m_sc[h]                                            # (TQ, 1)
        m_new = jnp.maximum(m_prev, jnp.max(s, axis=-1, keepdims=True))
        alpha = jnp.exp(m_prev - m_new)                             # 0 at first step
        p = jnp.exp(s - m_new)                                      # (TQ, TK) f32
        l_sc[h] = alpha * l_sc[h] + jnp.sum(p, axis=-1, keepdims=True)
        acc_sc[h] = alpha * acc_sc[h] + jnp.dot(
            p.astype(compute_dtype), v_h, preferred_element_type=jnp.float32)
        m_sc[h] = m_new

    # ---- finalize: normalize and store each head straight into its D-slice ----
    @pl.when(ki == pl.num_programs(2) - 1)
    def _finalize():
        for h in range(n_heads):
            # approx reciprocal (~2^-12 rel err): fine for inference; use exact if
            # this kernel is ever used for training.
            inv_l = pl.reciprocal(l_sc[h], approx=True)             # (TQ, 1), EUP slot
            o_ref[0, :, h * d_head:(h + 1) * d_head] = (
                acc_sc[h] * inv_l).astype(o_ref.dtype)


def _pick_tile(n, target):
    """Largest tile <= target that divides n and keeps the sublane dim a multiple of 8."""
    if n <= target:
        return n
    for t in range(min(target, n), 7, -1):
        if n % t == 0 and t % 8 == 0:
            return t
    return n  # fall back to no tiling along this axis


def multi_head_self_attention(x, wq, bq, wk, bk, wv, bv, *, n_heads,
                              use_bf16=True, block_q=256, block_kv=256):
    """x: (B, N, D).  wq/wk/wv: (H, d_head, d_head) in PyTorch (out, in) convention,
    bq/bk/bv: (H, d_head).  Returns (B, N, D) matching the PyTorch module."""
    B, N, D = x.shape
    assert D % n_heads == 0
    d_head = D // n_heads
    scale = 1.0 / (d_head ** 0.5)
    compute_dtype = jnp.bfloat16 if use_bf16 else x.dtype

    tq = _pick_tile(N, block_q)   # >=256 preferred on v6e/v7x; full N if small
    tk = _pick_tile(N, block_kv)
    assert N % tq == 0 and N % tk == 0

    # One-time tiny weight repack: per-head W.T stacked as (H, dh, dh) so the kernel
    # does y = x @ W with no in-kernel transpose; 1/sqrt(d_head) folded into the Q
    # projection; pre-cast to the compute dtype (no per-step casts in the kernel).
    wq_t = (jnp.transpose(wq, (0, 2, 1)) * scale).astype(compute_dtype)
    wk_t = jnp.transpose(wk, (0, 2, 1)).astype(compute_dtype)
    wv_t = jnp.transpose(wv, (0, 2, 1)).astype(compute_dtype)
    bq_f = (bq * scale).reshape(n_heads, 1, d_head).astype(jnp.float32)
    bk_f = bk.reshape(n_heads, 1, d_head).astype(jnp.float32)
    bv_f = bv.reshape(n_heads, 1, d_head).astype(jnp.float32)

    kernel = functools.partial(_mhsa_kernel, n_heads=n_heads, d_head=d_head,
                               compute_dtype=compute_dtype)

    grid = (B, N // tq, N // tk)

    xq_spec = pl.BlockSpec((1, tq, D), lambda b, qi, ki: (b, qi, 0))
    xkv_spec = pl.BlockSpec((1, tk, D), lambda b, qi, ki: (b, ki, 0))
    # Constant block index -> weights/biases stay resident across the whole sweep.
    w_spec = pl.BlockSpec((n_heads, d_head, d_head), lambda b, qi, ki: (0, 0, 0))
    b_spec = pl.BlockSpec((n_heads, 1, d_head), lambda b, qi, ki: (0, 0, 0))
    o_spec = pl.BlockSpec((1, tq, D), lambda b, qi, ki: (b, qi, 0))

    scratch = [
        pltpu.VMEM((n_heads, tq, d_head), compute_dtype),   # projected Q, per head
        pltpu.VMEM((n_heads, tq, 1), jnp.float32),          # running max m
        pltpu.VMEM((n_heads, tq, 1), jnp.float32),          # running denom l
        pltpu.VMEM((n_heads, tq, d_head), jnp.float32),     # output accumulator
    ]

    # Explicit VMEM budget (double-buffered pipeline blocks + scratch + softmax temps),
    # with margin; v5e's scoped default is only 16 MiB.
    x_size = np.dtype(x.dtype).itemsize
    c_size = np.dtype(compute_dtype).itemsize
    vmem_bytes = (
        2 * (tq * D + tk * D + tq * D) * x_size              # xq / xkv / out blocks
        + 2 * 3 * n_heads * d_head * d_head * c_size         # weights
        + 2 * 3 * n_heads * 128 * 4                          # biases (lane padded)
        + n_heads * tq * d_head * (c_size + 4)               # q + acc scratch
        + 2 * n_heads * tq * 128 * 4                         # m, l (lane padded)
        + 4 * tq * tk * 4                                    # scores / p temporaries
    )
    vmem_limit = int(min(100 * 2**20, max(16 * 2**20, 2 * vmem_bytes)))

    flops = 2 * B * (3 * N * D * d_head + 2 * n_heads * N * N * d_head)
    transcendentals = B * n_heads * N * N
    bytes_accessed = int((2 * B * N * D + B * N * D) * x_size
                         + 3 * n_heads * d_head * (d_head * c_size + 4))

    return pl.pallas_call(
        kernel,
        out_shape=jax.ShapeDtypeStruct((B, N, D), x.dtype),
        grid_spec=pltpu.PrefetchScalarGridSpec(
            num_scalar_prefetch=0,
            grid=grid,
            in_specs=[xq_spec, xkv_spec, w_spec, b_spec, w_spec, b_spec,
                      w_spec, b_spec],
            out_specs=o_spec,
            scratch_shapes=scratch,
        ),
        compiler_params=pltpu.CompilerParams(
            dimension_semantics=("parallel", "parallel", "arbitrary"),
            vmem_limit_bytes=vmem_limit),
        cost_estimate=pl.CostEstimate(flops=flops,
                                      transcendentals=transcendentals,
                                      bytes_accessed=bytes_accessed),
    )(x, x, wq_t, bq_f, wk_t, bk_f, wv_t, bv_f)


def _reference(x, wq, bq, wk, bk, wv, bv, n_heads):
    B, N, D = x.shape
    d_head = D // n_heads
    xh = x.reshape(B, N, n_heads, d_head).transpose(0, 2, 1, 3)      # (B, H, N, dh)
    q = jnp.einsum('bhnd,hed->bhne', xh, wq) + bq[None, :, None, :]  # Linear: x @ W.T + b
    k = jnp.einsum('bhnd,hed->bhne', xh, wk) + bk[None, :, None, :]
    v = jnp.einsum('bhnd,hed->bhne', xh, wv) + bv[None, :, None, :]
    a = jax.nn.softmax(jnp.einsum('bhqe,bhke->bhqk', q, k) / d_head ** 0.5, axis=-1)
    o = jnp.einsum('bhqk,bhke->bhqe', a, v)
    return o.transpose(0, 2, 1, 3).reshape(B, N, D)


if __name__ == "__main__":
    n_heads = 2

    def make_inputs(key, B, N, D):
        d_head = D // n_heads
        ks = jax.random.split(key, 7)
        bound = 1.0 / np.sqrt(d_head)
        x = jax.random.normal(ks[0], (B, N, D), jnp.float32)
        wq = jax.random.uniform(ks[1], (n_heads, d_head, d_head), jnp.float32, -bound, bound)
        bq = jax.random.uniform(ks[2], (n_heads, d_head), jnp.float32, -bound, bound)
        wk = jax.random.uniform(ks[3], (n_heads, d_head, d_head), jnp.float32, -bound, bound)
        bk = jax.random.uniform(ks[4], (n_heads, d_head), jnp.float32, -bound, bound)
        wv = jax.random.uniform(ks[5], (n_heads, d_head, d_head), jnp.float32, -bound, bound)
        bv = jax.random.uniform(ks[6], (n_heads, d_head), jnp.float32, -bound, bound)
        return x, wq, bq, wk, bk, wv, bv

    # Primary shapes implied by the module: batch=2, seq=8, hidden=32 (d_head=16).
    args = make_inputs(jax.random.PRNGKey(0), 2, 8, 32)
    ref = _reference(*args, n_heads)

    out_f32 = multi_head_self_attention(*args, n_heads=n_heads, use_bf16=False)
    out_f32 = jax.block_until_ready(out_f32)
    np.testing.assert_allclose(np.asarray(out_f32), np.asarray(ref), atol=1e-2, rtol=1e-2)

    # Default bf16-operand / f32-accumulate path (v5e/v6e recommendation).
    out_bf16 = multi_head_self_attention(*args, n_heads=n_heads)
    out_bf16 = jax.block_until_ready(out_bf16)
    np.testing.assert_allclose(np.asarray(out_bf16), np.asarray(ref), atol=5e-2, rtol=5e-2)

    # Exercise the tiled online-softmax path (multiple Q tiles and KV tiles).
    args2 = make_inputs(jax.random.PRNGKey(1), 2, 32, 32)
    ref2 = _reference(*args2, n_heads)
    out2 = multi_head_self_attention(*args2, n_heads=n_heads, use_bf16=False,
                                     block_q=16, block_kv=8)
    out2 = jax.block_until_ready(out2)
    np.testing.assert_allclose(np.asarray(out2), np.asarray(ref2), atol=1e-2, rtol=1e-2)

    print("KERNEL_OK")
</pallas_src>

<mosaic_0001>
module attributes {stable_mosaic.version = 11 : i64} {
  func.func @_mhsa_kernel(%arg0: i32, %arg1: i32, %arg2: i32, %arg3: memref<1x8x32xf32, #tpu.memory_space<vmem>>, %arg4: memref<1x8x32xf32, #tpu.memory_space<vmem>>, %arg5: memref<2x16x16xf32, #tpu.memory_space<vmem>>, %arg6: memref<2x1x16xf32, #tpu.memory_space<vmem>>, %arg7: memref<2x16x16xf32, #tpu.memory_space<vmem>>, %arg8: memref<2x1x16xf32, #tpu.memory_space<vmem>>, %arg9: memref<2x16x16xf32, #tpu.memory_space<vmem>>, %arg10: memref<2x1x16xf32, #tpu.memory_space<vmem>>, %arg11: memref<1x8x32xf32, #tpu.memory_space<vmem>>, %arg12: memref<2x8x16xf32, #tpu.memory_space<vmem>>, %arg13: memref<2x8x1xf32, #tpu.memory_space<vmem>>, %arg14: memref<2x8x1xf32, #tpu.memory_space<vmem>>, %arg15: memref<2x8x16xf32, #tpu.memory_space<vmem>>) attributes {dimension_semantics = [#tpu.dimension_semantics<parallel>, #tpu.dimension_semantics<parallel>, #tpu.dimension_semantics<arbitrary>], iteration_bounds = array<i64: 2, 1, 1>, scalar_prefetch = 0 : i64, scratch_operands = 4 : i64, tpu.core_type = #tpu.core_type<tc>, window_params = [{transform_indices = @transform_0, window_bounds = array<i64: 1, 8, 32>}, {transform_indices = @transform_1, window_bounds = array<i64: 1, 8, 32>}, {pipeline_mode = #tpu.pipeline_mode<synchronous>, transform_indices = @transform_2, window_bounds = array<i64: 2, 16, 16>}, {pipeline_mode = #tpu.pipeline_mode<synchronous>, transform_indices = @transform_3, window_bounds = array<i64: 2, 1, 16>}, {pipeline_mode = #tpu.pipeline_mode<synchronous>, transform_indices = @transform_4, window_bounds = array<i64: 2, 16, 16>}, {pipeline_mode = #tpu.pipeline_mode<synchronous>, transform_indices = @transform_5, window_bounds = array<i64: 2, 1, 16>}, {pipeline_mode = #tpu.pipeline_mode<synchronous>, transform_indices = @transform_6, window_bounds = array<i64: 2, 16, 16>}, {pipeline_mode = #tpu.pipeline_mode<synchronous>, transform_indices = @transform_7, window_bounds = array<i64: 2, 1, 16>}, {transform_indices = @transform_8, window_bounds = array<i64: 1, 8, 32>}]} {
    %c0_i32 = arith.constant 0 : i32
    %0 = arith.cmpi eq, %arg2, %c0_i32 : i32
    %1 = arith.extui %0 : i1 to i32
    %c0_i32_0 = arith.constant 0 : i32
    %2 = arith.cmpi ne, %1, %c0_i32_0 : i32
    scf.if %2 {
      %cst_81 = arith.constant 0xFF800000 : f32
      %106 = vector.broadcast %cst_81 : f32 to vector<2x8x1xf32>
      %c0_82 = arith.constant 0 : index
      %c0_83 = arith.constant 0 : index
      %c0_84 = arith.constant 0 : index
      %107 = vector.load %arg13[%c0_82, %c0_83, %c0_84] : memref<2x8x1xf32, #tpu.memory_space<vmem>>, vector<2x8x1xf32>
      tpu.vector_store %arg13[%c0_82, %c0_83, %c0_84], %106 {strides = array<i32>} : memref<2x8x1xf32, #tpu.memory_space<vmem>>, vector<2x8x1xf32>,
      %cst_85 = arith.constant 0.000000e+00 : f32
      %108 = vector.broadcast %cst_85 : f32 to vector<2x8x1xf32>
      %c0_86 = arith.constant 0 : index
      %c0_87 = arith.constant 0 : index
      %c0_88 = arith.constant 0 : index
      %109 = vector.load %arg14[%c0_86, %c0_87, %c0_88] : memref<2x8x1xf32, #tpu.memory_space<vmem>>, vector<2x8x1xf32>
      tpu.vector_store %arg14[%c0_86, %c0_87, %c0_88], %108 {strides = array<i32>} : memref<2x8x1xf32, #tpu.memory_space<vmem>>, vector<2x8x1xf32>,
      %cst_89 = arith.constant 0.000000e+00 : f32
      %110 = vector.broadcast %cst_89 : f32 to vector<2x8x16xf32>
      %c0_90 = arith.constant 0 : index
      %c0_91 = arith.constant 0 : index
      %c0_92 = arith.constant 0 : index
      %111 = vector.load %arg15[%c0_90, %c0_91, %c0_92] : memref<2x8x16xf32, #tpu.memory_space<vmem>>, vector<2x8x16xf32>
      tpu.vector_store %arg15[%c0_90, %c0_91, %c0_92], %110 {strides = array<i32>} : memref<2x8x16xf32, #tpu.memory_space<vmem>>, vector<2x8x16xf32>,
      %c0_93 = arith.constant 0 : index
      %c0_94 = arith.constant 0 : index
      %c0_95 = arith.constant 0 : index
      %112 = vector.load %arg3[%c0_93, %c0_94, %c0_95] : memref<1x8x32xf32, #tpu.memory_space<vmem>>, vector<1x8x32xf32>
      %113 = vector.shape_cast %112 : vector<1x8x32xf32> to vector<8x32xf32>
      %114 = vector.extract_strided_slice %113 {offsets = [0, 0], sizes = [8, 16], strides = [1, 1]} : vector<8x32xf32> to vector<8x16xf32>
      %c0_96 = arith.constant 0 : index
      %c0_97 = arith.constant 0 : index
      %c0_98 = arith.constant 0 : index
      %115 = vector.load %arg5[%c0_96, %c0_97, %c0_98] : memref<2x16x16xf32, #tpu.memory_space<vmem>>, vector<1x16x16xf32>
      %116 = vector.shape_cast %115 : vector<1x16x16xf32> to vector<16x16xf32>
      %cst_99 = arith.constant dense<0.000000e+00> : vector<8x16xf32>
      %117 = tpu.matmul %114, %116, %cst_99 {dimension_numbers = #tpu.dot_dimension_numbers<[1], [0], [0], [1], [0, 0, 1, 1], [], []>} : vector<8x16xf32>, vector<16x16xf32>, vector<8x16xf32> -> vector<8x16xf32>
      %c0_100 = arith.constant 0 : index
      %c0_101 = arith.constant 0 : index
      %c0_102 = arith.constant 0 : index
      %118 = vector.load %arg6[%c0_100, %c0_101, %c0_102] : memref<2x1x16xf32, #tpu.memory_space<vmem>>, vector<1x1x16xf32>
      %119 = vector.shape_cast %118 : vector<1x1x16xf32> to vector<1x16xf32>
      %120 = vector.broadcast %119 : vector<1x16xf32> to vector<8x16xf32>
      %121 = arith.addf %117, %120 : vector<8x16xf32>
      %c0_103 = arith.constant 0 : index
      %c0_104 = arith.constant 0 : index
      %c0_105 = arith.constant 0 : index
      %122 = vector.load %arg12[%c0_103, %c0_104, %c0_105] : memref<2x8x16xf32, #tpu.memory_space<vmem>>, vector<1x8x16xf32>
      %123 = vector.shape_cast %122 : vector<1x8x16xf32> to vector<8x16xf32>
      %124 = vector.shape_cast %121 : vector<8x16xf32> to vector<1x8x16xf32>
      tpu.vector_store %arg12[%c0_103, %c0_104, %c0_105], %124 {strides = array<i32>} : memref<2x8x16xf32, #tpu.memory_space<vmem>>, vector<1x8x16xf32>,
      %125 = vector.extract_strided_slice %113 {offsets = [0, 16], sizes = [8, 16], strides = [1, 1]} : vector<8x32xf32> to vector<8x16xf32>
      %c1_106 = arith.constant 1 : index
      %c0_107 = arith.constant 0 : index
      %c0_108 = arith.constant 0 : index
      %126 = vector.load %arg5[%c1_106, %c0_107, %c0_108] : memref<2x16x16xf32, #tpu.memory_space<vmem>>, vector<1x16x16xf32>
      %127 = vector.shape_cast %126 : vector<1x16x16xf32> to vector<16x16xf32>
      %cst_109 = arith.constant dense<0.000000e+00> : vector<8x16xf32>
      %128 = tpu.matmul %125, %127, %cst_109 {dimension_numbers = #tpu.dot_dimension_numbers<[1], [0], [0], [1], [0, 0, 1, 1], [], []>} : vector<8x16xf32>, vector<16x16xf32>, vector<8x16xf32> -> vector<8x16xf32>
      %c1_110 = arith.constant 1 : index
      %c0_111 = arith.constant 0 : index
      %c0_112 = arith.constant 0 : index
      %129 = vector.load %arg6[%c1_110, %c0_111, %c0_112] : memref<2x1x16xf32, #tpu.memory_space<vmem>>, vector<1x1x16xf32>
      %130 = vector.shape_cast %129 : vector<1x1x16xf32> to vector<1x16xf32>
      %131 = vector.broadcast %130 : vector<1x16xf32> to vector<8x16xf32>
      %132 = arith.addf %128, %131 : vector<8x16xf32>
      %c1_113 = arith.constant 1 : index
      %c0_114 = arith.constant 0 : index
      %c0_115 = arith.constant 0 : index
      %133 = vector.load %arg12[%c1_113, %c0_114, %c0_115] : memref<2x8x16xf32, #tpu.memory_space<vmem>>, vector<1x8x16xf32>
      %134 = vector.shape_cast %133 : vector<1x8x16xf32> to vector<8x16xf32>
      %135 = vector.shape_cast %132 : vector<8x16xf32> to vector<1x8x16xf32>
      tpu.vector_store %arg12[%c1_113, %c0_114, %c0_115], %135 {strides = array<i32>} : memref<2x8x16xf32, #tpu.memory_space<vmem>>, vector<1x8x16xf32>,
    } else {
    }
    %c0 = arith.constant 0 : index
    %c0_1 = arith.constant 0 : index
    %c0_2 = arith.constant 0 : index
    %3 = vector.load %arg4[%c0, %c0_1, %c0_2] : memref<1x8x32xf32, #tpu.memory_space<vmem>>, vector<1x8x32xf32>
    %4 = vector.shape_cast %3 : vector<1x8x32xf32> to vector<8x32xf32>
    %5 = vector.extract_strided_slice %4 {offsets = [0, 0], sizes = [8, 16], strides = [1, 1]} : vector<8x32xf32> to vector<8x16xf32>
    %c0_3 = arith.constant 0 : index
    %c0_4 = arith.constant 0 : index
    %c0_5 = arith.constant 0 : index
    %6 = vector.load %arg7[%c0_3, %c0_4, %c0_5] : memref<2x16x16xf32, #tpu.memory_space<vmem>>, vector<1x16x16xf32>
    %7 = vector.shape_cast %6 : vector<1x16x16xf32> to vector<16x16xf32>
    %cst = arith.constant dense<0.000000e+00> : vector<8x16xf32>
    %8 = tpu.matmul %5, %7, %cst {dimension_numbers = #tpu.dot_dimension_numbers<[1], [0], [0], [1], [0, 0, 1, 1], [], []>} : vector<8x16xf32>, vector<16x16xf32>, vector<8x16xf32> -> vector<8x16xf32>
    %c0_6 = arith.constant 0 : index
    %c0_7 = arith.constant 0 : index
    %c0_8 = arith.constant 0 : index
    %9 = vector.load %arg8[%c0_6, %c0_7, %c0_8] : memref<2x1x16xf32, #tpu.memory_space<vmem>>, vector<1x1x16xf32>
    %10 = vector.shape_cast %9 : vector<1x1x16xf32> to vector<1x16xf32>
    %11 = vector.broadcast %10 : vector<1x16xf32> to vector<8x16xf32>
    %12 = arith.addf %8, %11 : vector<8x16xf32>
    %c0_9 = arith.constant 0 : index
    %c0_10 = arith.constant 0 : index
    %c0_11 = arith.constant 0 : index
    %13 = vector.load %arg9[%c0_9, %c0_10, %c0_11] : memref<2x16x16xf32, #tpu.memory_space<vmem>>, vector<1x16x16xf32>
    %14 = vector.shape_cast %13 : vector<1x16x16xf32> to vector<16x16xf32>
    %cst_12 = arith.constant dense<0.000000e+00> : vector<8x16xf32>
    %15 = tpu.matmul %5, %14, %cst_12 {dimension_numbers = #tpu.dot_dimension_numbers<[1], [0], [0], [1], [0, 0, 1, 1], [], []>} : vector<8x16xf32>, vector<16x16xf32>, vector<8x16xf32> -> vector<8x16xf32>
    %c0_13 = arith.constant 0 : index
    %c0_14 = arith.constant 0 : index
    %c0_15 = arith.constant 0 : index
    %16 = vector.load %arg10[%c0_13, %c0_14, %c0_15] : memref<2x1x16xf32, #tpu.memory_space<vmem>>, vector<1x1x16xf32>
    %17 = vector.shape_cast %16 : vector<1x1x16xf32> to vector<1x16xf32>
    %18 = vector.broadcast %17 : vector<1x16xf32> to vector<8x16xf32>
    %19 = arith.addf %15, %18 : vector<8x16xf32>
    %c0_16 = arith.constant 0 : index
    %c0_17 = arith.constant 0 : index
    %c0_18 = arith.constant 0 : index
    %20 = vector.load %arg12[%c0_16, %c0_17, %c0_18] : memref<2x8x16xf32, #tpu.memory_space<vmem>>, vector<1x8x16xf32>
    %21 = vector.shape_cast %20 : vector<1x8x16xf32> to vector<8x16xf32>
    %cst_19 = arith.constant dense<0.000000e+00> : vector<8x8xf32>
    %22 = tpu.matmul %21, %12, %cst_19 {dimension_numbers = #tpu.dot_dimension_numbers<[1], [1], [0], [0], [0, 0, 1, 0], [], []>} : vector<8x16xf32>, vector<8x16xf32>, vector<8x8xf32> -> vector<8x8xf32>
    %c0_20 = arith.constant 0 : index
    %c0_21 = arith.constant 0 : index
    %c0_22 = arith.constant 0 : index
    %23 = vector.load %arg13[%c0_20, %c0_21, %c0_22] : memref<2x8x1xf32, #tpu.memory_space<vmem>>, vector<1x8x1xf32>
    %24 = vector.shape_cast %23 : vector<1x8x1xf32> to vector<8x1xf32>
    %cst_23 = arith.constant dense<0xFF800000> : vector<8xf32>
    %25 = vector.multi_reduction <maximumf>, %22, %cst_23 [1] : vector<8x8xf32> to vector<8xf32>
    %26 = vector.shape_cast %25 : vector<8xf32> to vector<8x1xf32>
    %27 = arith.maximumf %24, %26 : vector<8x1xf32>
    %28 = arith.subf %24, %27 : vector<8x1xf32>
    %29 = math.exp %28 : vector<8x1xf32>
    %30 = vector.broadcast %27 : vector<8x1xf32> to vector<8x8xf32>
    %31 = arith.subf %22, %30 : vector<8x8xf32>
    %32 = math.exp %31 : vector<8x8xf32>
    %c0_24 = arith.constant 0 : index
    %c0_25 = arith.constant 0 : index
    %c0_26 = arith.constant 0 : index
    %33 = vector.load %arg14[%c0_24, %c0_25, %c0_26] : memref<2x8x1xf32, #tpu.memory_space<vmem>>, vector<1x8x1xf32>
    %34 = vector.shape_cast %33 : vector<1x8x1xf32> to vector<8x1xf32>
    %35 = arith.mulf %29, %34 : vector<8x1xf32>
    %cst_27 = arith.constant dense<0.000000e+00> : vector<8xf32>
    %36 = vector.multi_reduction <add>, %32, %cst_27 [1] : vector<8x8xf32> to vector<8xf32>
    %37 = vector.shape_cast %36 : vector<8xf32> to vector<8x1xf32>
    %38 = arith.addf %35, %37 : vector<8x1xf32>
    %c0_28 = arith.constant 0 : index
    %c0_29 = arith.constant 0 : index
    %c0_30 = arith.constant 0 : index
    %39 = vector.load %arg14[%c0_28, %c0_29, %c0_30] : memref<2x8x1xf32, #tpu.memory_space<vmem>>, vector<1x8x1xf32>
    %40 = vector.shape_cast %39 : vector<1x8x1xf32> to vector<8x1xf32>
    %41 = vector.shape_cast %38 : vector<8x1xf32> to vector<1x8x1xf32>
    tpu.vector_store %arg14[%c0_28, %c0_29, %c0_30], %41 {strides = array<i32>} : memref<2x8x1xf32, #tpu.memory_space<vmem>>, vector<1x8x1xf32>,
    %c0_31 = arith.constant 0 : index
    %c0_32 = arith.constant 0 : index
    %c0_33 = arith.constant 0 : index
    %42 = vector.load %arg15[%c0_31, %c0_32, %c0_33] : memref<2x8x16xf32, #tpu.memory_space<vmem>>, vector<1x8x16xf32>
    %43 = vector.shape_cast %42 : vector<1x8x16xf32> to vector<8x16xf32>
    %44 = vector.broadcast %29 : vector<8x1xf32> to vector<8x16xf32>
    %45 = arith.mulf %44, %43 : vector<8x16xf32>
    %cst_34 = arith.constant dense<0.000000e+00> : vector<8x16xf32>
    %46 = tpu.matmul %32, %19, %cst_34 {dimension_numbers = #tpu.dot_dimension_numbers<[1], [0], [0], [1], [0, 0, 1, 1], [], []>} : vector<8x8xf32>, vector<8x16xf32>, vector<8x16xf32> -> vector<8x16xf32>
    %47 = arith.addf %45, %46 : vector<8x16xf32>
    %c0_35 = arith.constant 0 : index
    %c0_36 = arith.constant 0 : index
    %c0_37 = arith.constant 0 : index
    %48 = vector.load %arg15[%c0_35, %c0_36, %c0_37] : memref<2x8x16xf32, #tpu.memory_space<vmem>>, vector<1x8x16xf32>
    %49 = vector.shape_cast %48 : vector<1x8x16xf32> to vector<8x16xf32>
    %50 = vector.shape_cast %47 : vector<8x16xf32> to vector<1x8x16xf32>
    tpu.vector_store %arg15[%c0_35, %c0_36, %c0_37], %50 {strides = array<i32>} : memref<2x8x16xf32, #tpu.memory_space<vmem>>, vector<1x8x16xf32>,
    %c0_38 = arith.constant 0 : index
    %c0_39 = arith.constant 0 : index
    %c0_40 = arith.constant 0 : index
    %51 = vector.load %arg13[%c0_38, %c0_39, %c0_40] : memref<2x8x1xf32, #tpu.memory_space<vmem>>, vector<1x8x1xf32>
    %52 = vector.shape_cast %51 : vector<1x8x1xf32> to vector<8x1xf32>
    %53 = vector.shape_cast %27 : vector<8x1xf32> to vector<1x8x1xf32>
    tpu.vector_store %arg13[%c0_38, %c0_39, %c0_40], %53 {strides = array<i32>} : memref<2x8x1xf32, #tpu.memory_space<vmem>>, vector<1x8x1xf32>,
    %54 = vector.extract_strided_slice %4 {offsets = [0, 16], sizes = [8, 16], strides = [1, 1]} : vector<8x32xf32> to vector<8x16xf32>
    %c1 = arith.constant 1 : index
    %c0_41 = arith.constant 0 : index
    %c0_42 = arith.constant 0 : index
    %55 = vector.load %arg7[%c1, %c0_41, %c0_42] : memref<2x16x16xf32, #tpu.memory_space<vmem>>, vector<1x16x16xf32>
    %56 = vector.shape_cast %55 : vector<1x16x16xf32> to vector<16x16xf32>
    %cst_43 = arith.constant dense<0.000000e+00> : vector<8x16xf32>
    %57 = tpu.matmul %54, %56, %cst_43 {dimension_numbers = #tpu.dot_dimension_numbers<[1], [0], [0], [1], [0, 0, 1, 1], [], []>} : vector<8x16xf32>, vector<16x16xf32>, vector<8x16xf32> -> vector<8x16xf32>
    %c1_44 = arith.constant 1 : index
    %c0_45 = arith.constant 0 : index
    %c0_46 = arith.constant 0 : index
    %58 = vector.load %arg8[%c1_44, %c0_45, %c0_46] : memref<2x1x16xf32, #tpu.memory_space<vmem>>, vector<1x1x16xf32>
    %59 = vector.shape_cast %58 : vector<1x1x16xf32> to vector<1x16xf32>
    %60 = vector.broadcast %59 : vector<1x16xf32> to vector<8x16xf32>
    %61 = arith.addf %57, %60 : vector<8x16xf32>
    %c1_47 = arith.constant 1 : index
    %c0_48 = arith.constant 0 : index
    %c0_49 = arith.constant 0 : index
    %62 = vector.load %arg9[%c1_47, %c0_48, %c0_49] : memref<2x16x16xf32, #tpu.memory_space<vmem>>, vector<1x16x16xf32>
    %63 = vector.shape_cast %62 : vector<1x16x16xf32> to vector<16x16xf32>
    %cst_50 = arith.constant dense<0.000000e+00> : vector<8x16xf32>
    %64 = tpu.matmul %54, %63, %cst_50 {dimension_numbers = #tpu.dot_dimension_numbers<[1], [0], [0], [1], [0, 0, 1, 1], [], []>} : vector<8x16xf32>, vector<16x16xf32>, vector<8x16xf32> -> vector<8x16xf32>
    %c1_51 = arith.constant 1 : index
    %c0_52 = arith.constant 0 : index
    %c0_53 = arith.constant 0 : index
    %65 = vector.load %arg10[%c1_51, %c0_52, %c0_53] : memref<2x1x16xf32, #tpu.memory_space<vmem>>, vector<1x1x16xf32>
    %66 = vector.shape_cast %65 : vector<1x1x16xf32> to vector<1x16xf32>
    %67 = vector.broadcast %66 : vector<1x16xf32> to vector<8x16xf32>
    %68 = arith.addf %64, %67 : vector<8x16xf32>
    %c1_54 = arith.constant 1 : index
    %c0_55 = arith.constant 0 : index
    %c0_56 = arith.constant 0 : index
    %69 = vector.load %arg12[%c1_54, %c0_55, %c0_56] : memref<2x8x16xf32, #tpu.memory_space<vmem>>, vector<1x8x16xf32>
    %70 = vector.shape_cast %69 : vector<1x8x16xf32> to vector<8x16xf32>
    %cst_57 = arith.constant dense<0.000000e+00> : vector<8x8xf32>
    %71 = tpu.matmul %70, %61, %cst_57 {dimension_numbers = #tpu.dot_dimension_numbers<[1], [1], [0], [0], [0, 0, 1, 0], [], []>} : vector<8x16xf32>, vector<8x16xf32>, vector<8x8xf32> -> vector<8x8xf32>
    %c1_58 = arith.constant 1 : index
    %c0_59 = arith.constant 0 : index
    %c0_60 = arith.constant 0 : index
    %72 = vector.load %arg13[%c1_58, %c0_59, %c0_60] : memref<2x8x1xf32, #tpu.memory_space<vmem>>, vector<1x8x1xf32>
    %73 = vector.shape_cast %72 : vector<1x8x1xf32> to vector<8x1xf32>
    %cst_61 = arith.constant dense<0xFF800000> : vector<8xf32>
    %74 = vector.multi_reduction <maximumf>, %71, %cst_61 [1] : vector<8x8xf32> to vector<8xf32>
    %75 = vector.shape_cast %74 : vector<8xf32> to vector<8x1xf32>
    %76 = arith.maximumf %73, %75 : vector<8x1xf32>
    %77 = arith.subf %73, %76 : vector<8x1xf32>
    %78 = math.exp %77 : vector<8x1xf32>
    %79 = vector.broadcast %76 : vector<8x1xf32> to vector<8x8xf32>
    %80 = arith.subf %71, %79 : vector<8x8xf32>
    %81 = math.exp %80 : vector<8x8xf32>
    %c1_62 = arith.constant 1 : index
    %c0_63 = arith.constant 0 : index
    %c0_64 = arith.constant 0 : index
    %82 = vector.load %arg14[%c1_62, %c0_63, %c0_64] : memref<2x8x1xf32, #tpu.memory_space<vmem>>, vector<1x8x1xf32>
    %83 = vector.shape_cast %82 : vector<1x8x1xf32> to vector<8x1xf32>
    %84 = arith.mulf %78, %83 : vector<8x1xf32>
    %cst_65 = arith.constant dense<0.000000e+00> : vector<8xf32>
    %85 = vector.multi_reduction <add>, %81, %cst_65 [1] : vector<8x8xf32> to vector<8xf32>
    %86 = vector.shape_cast %85 : vector<8xf32> to vector<8x1xf32>
    %87 = arith.addf %84, %86 : vector<8x1xf32>
    %c1_66 = arith.constant 1 : index
    %c0_67 = arith.constant 0 : index
    %c0_68 = arith.constant 0 : index
    %88 = vector.load %arg14[%c1_66, %c0_67, %c0_68] : memref<2x8x1xf32, #tpu.memory_space<vmem>>, vector<1x8x1xf32>
    %89 = vector.shape_cast %88 : vector<1x8x1xf32> to vector<8x1xf32>
    %90 = vector.shape_cast %87 : vector<8x1xf32> to vector<1x8x1xf32>
    tpu.vector_store %arg14[%c1_66, %c0_67, %c0_68], %90 {strides = array<i32>} : memref<2x8x1xf32, #tpu.memory_space<vmem>>, vector<1x8x1xf32>,
    %c1_69 = arith.constant 1 : index
    %c0_70 = arith.constant 0 : index
    %c0_71 = arith.constant 0 : index
    %91 = vector.load %arg15[%c1_69, %c0_70, %c0_71] : memref<2x8x16xf32, #tpu.memory_space<vmem>>, vector<1x8x16xf32>
    %92 = vector.shape_cast %91 : vector<1x8x16xf32> to vector<8x16xf32>
    %93 = vector.broadcast %78 : vector<8x1xf32> to vector<8x16xf32>
    %94 = arith.mulf %93, %92 : vector<8x16xf32>
    %cst_72 = arith.constant dense<0.000000e+00> : vector<8x16xf32>
    %95 = tpu.matmul %81, %68, %cst_72 {dimension_numbers = #tpu.dot_dimension_numbers<[1], [0], [0], [1], [0, 0, 1, 1], [], []>} : vector<8x8xf32>, vector<8x16xf32>, vector<8x16xf32> -> vector<8x16xf32>
    %96 = arith.addf %94, %95 : vector<8x16xf32>
    %c1_73 = arith.constant 1 : index
    %c0_74 = arith.constant 0 : index
    %c0_75 = arith.constant 0 : index
    %97 = vector.load %arg15[%c1_73, %c0_74, %c0_75] : memref<2x8x16xf32, #tpu.memory_space<vmem>>, vector<1x8x16xf32>
    %98 = vector.shape_cast %97 : vector<1x8x16xf32> to vector<8x16xf32>
    %99 = vector.shape_cast %96 : vector<8x16xf32> to vector<1x8x16xf32>
    tpu.vector_store %arg15[%c1_73, %c0_74, %c0_75], %99 {strides = array<i32>} : memref<2x8x16xf32, #tpu.memory_space<vmem>>, vector<1x8x16xf32>,
    %c1_76 = arith.constant 1 : index
    %c0_77 = arith.constant 0 : index
    %c0_78 = arith.constant 0 : index
    %100 = vector.load %arg13[%c1_76, %c0_77, %c0_78] : memref<2x8x1xf32, #tpu.memory_space<vmem>>, vector<1x8x1xf32>
    %101 = vector.shape_cast %100 : vector<1x8x1xf32> to vector<8x1xf32>
    %102 = vector.shape_cast %76 : vector<8x1xf32> to vector<1x8x1xf32>
    tpu.vector_store %arg13[%c1_76, %c0_77, %c0_78], %102 {strides = array<i32>} : memref<2x8x1xf32, #tpu.memory_space<vmem>>, vector<1x8x1xf32>,
    %c0_i32_79 = arith.constant 0 : i32
    %103 = arith.cmpi eq, %arg2, %c0_i32_79 : i32
    %104 = arith.extui %103 : i1 to i32
    %c0_i32_80 = arith.constant 0 : i32
    %105 = arith.cmpi ne, %104, %c0_i32_80 : i32
    scf.if %105 {
      %c0_81 = arith.constant 0 : index
      %c0_82 = arith.constant 0 : index
      %c0_83 = arith.constant 0 : index
      %106 = vector.load %arg14[%c0_81, %c0_82, %c0_83] : memref<2x8x1xf32, #tpu.memory_space<vmem>>, vector<1x8x1xf32>
      %107 = vector.shape_cast %106 : vector<1x8x1xf32> to vector<8x1xf32>
      %108 = tpu.reciprocal %107 {approx = true} : vector<8x1xf32> -> vector<8x1xf32>
      %c0_84 = arith.constant 0 : index
      %c0_85 = arith.constant 0 : index
      %c0_86 = arith.constant 0 : index
      %109 = vector.load %arg15[%c0_84, %c0_85, %c0_86] : memref<2x8x16xf32, #tpu.memory_space<vmem>>, vector<1x8x16xf32>
      %110 = vector.shape_cast %109 : vector<1x8x16xf32> to vector<8x16xf32>
      %111 = vector.broadcast %108 : vector<8x1xf32> to vector<8x16xf32>
      %112 = arith.mulf %110, %111 : vector<8x16xf32>
      %c0_87 = arith.constant 0 : index
      %c0_88 = arith.constant 0 : index
      %c0_89 = arith.constant 0 : index
      %113 = vector.load %arg11[%c0_87, %c0_88, %c0_89] : memref<1x8x32xf32, #tpu.memory_space<vmem>>, vector<1x8x16xf32>
      %114 = vector.shape_cast %113 : vector<1x8x16xf32> to vector<8x16xf32>
      %115 = vector.shape_cast %112 : vector<8x16xf32> to vector<1x8x16xf32>
      tpu.vector_store %arg11[%c0_87, %c0_88, %c0_89], %115 {strides = array<i32>} : memref<1x8x32xf32, #tpu.memory_space<vmem>>, vector<1x8x16xf32>,
      %c1_90 = arith.constant 1 : index
      %c0_91 = arith.constant 0 : index
      %c0_92 = arith.constant 0 : index
      %116 = vector.load %arg14[%c1_90, %c0_91, %c0_92] : memref<2x8x1xf32, #tpu.memory_space<vmem>>, vector<1x8x1xf32>
      %117 = vector.shape_cast %116 : vector<1x8x1xf32> to vector<8x1xf32>
      %118 = tpu.reciprocal %117 {approx = true} : vector<8x1xf32> -> vector<8x1xf32>
      %c1_93 = arith.constant 1 : index
      %c0_94 = arith.constant 0 : index
      %c0_95 = arith.constant 0 : index
      %119 = vector.load %arg15[%c1_93, %c0_94, %c0_95] : memref<2x8x16xf32, #tpu.memory_space<vmem>>, vector<1x8x16xf32>
      %120 = vector.shape_cast %119 : vector<1x8x16xf32> to vector<8x16xf32>
      %121 = vector.broadcast %118 : vector<8x1xf32> to vector<8x16xf32>
      %122 = arith.mulf %120, %121 : vector<8x16xf32>
      %c0_96 = arith.constant 0 : index
      %c0_97 = arith.constant 0 : index
      %c16 = arith.constant 16 : index
      %123 = vector.load %arg11[%c0_96, %c0_97, %c16] : memref<1x8x32xf32, #tpu.memory_space<vmem>>, vector<1x8x16xf32>
      %124 = vector.shape_cast %123 : vector<1x8x16xf32> to vector<8x16xf32>
      %125 = vector.shape_cast %122 : vector<8x16xf32> to vector<1x8x16xf32>
      tpu.vector_store %arg11[%c0_96, %c0_97, %c16], %125 {strides = array<i32>} : memref<1x8x32xf32, #tpu.memory_space<vmem>>, vector<1x8x16xf32>,
    } else {
    }
    return
  }
  func.func @transform_0(%arg0: i32, %arg1: i32, %arg2: i32) -> (i32, i32, i32) {
    %c0_i32 = arith.constant 0 : i32
    %c0_i32_0 = arith.constant 0 : i32
    return %arg0, %arg1, %c0_i32 : i32, i32, i32
  }
  func.func @transform_1(%arg0: i32, %arg1: i32, %arg2: i32) -> (i32, i32, i32) {
    %c0_i32 = arith.constant 0 : i32
    %c0_i32_0 = arith.constant 0 : i32
    return %arg0, %arg2, %c0_i32 : i32, i32, i32
  }
  func.func @transform_2(%arg0: i32, %arg1: i32, %arg2: i32) -> (i32, i32, i32) {
    %c0_i32 = arith.constant 0 : i32
    %c0_i32_0 = arith.constant 0 : i32
    %c0_i32_1 = arith.constant 0 : i32
    %c0_i32_2 = arith.constant 0 : i32
    return %c0_i32, %c0_i32_0, %c0_i32_1 : i32, i32, i32
  }
  func.func @transform_3(%arg0: i32, %arg1: i32, %arg2: i32) -> (i32, i32, i32) {
    %c0_i32 = arith.constant 0 : i32
    %c0_i32_0 = arith.constant 0 : i32
    %c0_i32_1 = arith.constant 0 : i32
    %c0_i32_2 = arith.constant 0 : i32
    return %c0_i32, %c0_i32_0, %c0_i32_1 : i32, i32, i32
  }
  func.func @transform_4(%arg0: i32, %arg1: i32, %arg2: i32) -> (i32, i32, i32) {
    %c0_i32 = arith.constant 0 : i32
    %c0_i32_0 = arith.constant 0 : i32
    %c0_i32_1 = arith.constant 0 : i32
    %c0_i32_2 = arith.constant 0 : i32
    return %c0_i32, %c0_i32_0, %c0_i32_1 : i32, i32, i32
  }
  func.func @transform_5(%arg0: i32, %arg1: i32, %arg2: i32) -> (i32, i32, i32) {
    %c0_i32 = arith.constant 0 : i32
    %c0_i32_0 = arith.constant 0 : i32
    %c0_i32_1 = arith.constant 0 : i32
    %c0_i32_2 = arith.constant 0 : i32
    return %c0_i32, %c0_i32_0, %c0_i32_1 : i32, i32, i32
  }
  func.func @transform_6(%arg0: i32, %arg1: i32, %arg2: i32) -> (i32, i32, i32) {
    %c0_i32 = arith.constant 0 : i32
    %c0_i32_0 = arith.constant 0 : i32
    %c0_i32_1 = arith.constant 0 : i32
    %c0_i32_2 = arith.constant 0 : i32
    return %c0_i32, %c0_i32_0, %c0_i32_1 : i32, i32, i32
  }
  func.func @transform_7(%arg0: i32, %arg1: i32, %arg2: i32) -> (i32, i32, i32) {
    %c0_i32 = arith.constant 0 : i32
    %c0_i32_0 = arith.constant 0 : i32
    %c0_i32_1 = arith.constant 0 : i32
    %c0_i32_2 = arith.constant 0 : i32
    return %c0_i32, %c0_i32_0, %c0_i32_1 : i32, i32, i32
  }
  func.func @transform_8(%arg0: i32, %arg1: i32, %arg2: i32) -> (i32, i32, i32) {
    %c0_i32 = arith.constant 0 : i32
    %c0_i32_0 = arith.constant 0 : i32
    return %arg0, %arg1, %c0_i32 : i32, i32, i32
  }
}

</mosaic_0001>

<llo_original>
// kernel: tpu_custom_call.1
$region0: #{tpu_custom_call.1}
  #allocation0 [shape = 'u32[]', space=smem, size = 0x4, offset = 0x4, fixed_abs, tag = 'smem constant byte address 0x4 - core index']
  #allocation1 [shape = 'u32[144,128]{1,0:T(1,128)}', space=vmem, size = 0x12000, scoped, tag = 'internal scratch']
  #allocation2 [shape = 'f32[2,8,16]{2,1,0:T(8,128)}', space=vmem, size = 0x2000, scoped, tag = 'scratch operand']
  #allocation3 [shape = 'f32[2,8,1]{2,1,0:T(8,128)}', space=vmem, size = 0x2000, scoped, tag = 'scratch operand']
  #allocation4 [shape = 'f32[2,8,1]{2,1,0:T(8,128)}', space=vmem, size = 0x2000, scoped, tag = 'scratch operand']
  #allocation5 [shape = 'f32[2,8,16]{2,1,0:T(8,128)}', space=vmem, size = 0x2000, scoped, tag = 'scratch operand']
  %s0 = inlined_call_operand.hbm [shape: f32[2,8,32], index: 0, kind: input, shape index: {}]
  %s1 = inlined_call_operand.hbm [shape: f32[2,8,32], index: 1, kind: input, shape index: {}]
  %s2 = inlined_call_operand.hbm [shape: f32[2,16,16], index: 2, kind: input, shape index: {}]
  %s3 = inlined_call_operand.vmem [shape: f32[2,1,16], index: 3, kind: input, shape index: {}]
  %s4 = inlined_call_operand.hbm [shape: f32[2,16,16], index: 4, kind: input, shape index: {}]
  %s5 = inlined_call_operand.vmem [shape: f32[2,1,16], index: 5, kind: input, shape index: {}]
  %s6 = inlined_call_operand.hbm [shape: f32[2,16,16], index: 6, kind: input, shape index: {}]
  %s7 = inlined_call_operand.vmem [shape: f32[2,1,16], index: 7, kind: input, shape index: {}]
  %s8 = inlined_call_operand.hbm [shape: f32[2,8,32], index: 8, kind: output, shape index: {}]
  %s9 = sld [smem:[#allocation0]]
  $region93: #{tpu_custom_call.1} parent=0
    _
  %s11 = ssub.s32 1, %s9
  %s12 = scalar_select 0, %s11, %s9
  $region1: #{tpu_custom_call.1} parent=0
    #allocation6 [shape = 'u8[8192]{0}', space=vmem, size = 0x2000, scoped, tag = 'input window, operand 0']
    #allocation7 [shape = 's32[2]{0}', space=sflag, size = 0x8, scoped, tag = 'scoped memory for tpu_custom_call.1']
    #allocation8 [shape = 's32[2]{0}', space=sflag, size = 0x8, scoped, tag = 'scoped memory for tpu_custom_call.1']
    #allocation9 [shape = 'u8[8192]{0}', space=vmem, size = 0x2000, scoped, tag = 'input window, operand 1']
    #allocation10 [shape = 's32[2]{0}', space=sflag, size = 0x8, scoped, tag = 'scoped memory for tpu_custom_call.1']
    #allocation11 [shape = 'u8[16384]{0}', space=vmem, size = 0x4000, scoped, tag = 'input window, operand 2, single buffered']
    #allocation12 [shape = 'u8[16384]{0}', space=vmem, size = 0x4000, scoped, tag = 'input window, operand 4, single buffered']
    #allocation13 [shape = 's32[1]{0}', space=sflag, size = 0x4, scoped, tag = 'scoped memory for tpu_custom_call.1']
    #allocation14 [shape = 'u8[16384]{0}', space=vmem, size = 0x4000, scoped, tag = 'input window, operand 6, single buffered']
    #allocation15 [shape = 'u8[8192]{0}', space=vmem, size = 0x2000, scoped, tag = 'output window, operand 0']
    %13 = vsyncpa [#allocation7], 0
    %s14 = scalar_lea.sflag [#allocation7], 1
    %15 = vsyncpa %s14, 0
    %16 = vsyncpa [#allocation10], 0
    %s17 = scalar_lea.sflag [#allocation10], 1
    %18 = vsyncpa %s17, 0
    %19 = vsyncpa [#allocation13], 0
    %20 = vsyncpa [#allocation8], 0
    %s21 = scalar_lea.sflag [#allocation8], 1
    %22 = vsyncpa %s21, 0
    loop: start=0, step=1, limit=4
    $region2: #{tpu_custom_call.1} parent=1 // loop_pre_header
      _
    $region3: #{tpu_custom_call.1} parent=1 // loop_header
      %s24 = sphi 0, %s28
      %p25 = scmp.ge.s32.totalorder %s24, 4
      %s31 = sphi 0, %s50
      %s32 = sphi 0, %s46
      %s33 = sphi 0, %s42
      %s34 = sphi 0, %s31
      %s35 = sphi 0, %s32
      %s36 = sphi 0, %s33
      %s37 = sphi 0, %s34
      %s38 = sphi 0, %s35
      %s39 = sphi 0, %s36
      %s55 = sphi 0, %s57
      %s58 = sphi 0, %s55
      %s59 = sphi 0, %s58
      %s75 = sphi 0, %s59
      %s83 = sphi 0, %s85
      %s86 = sphi 0, %s83
      %s87 = sphi 0, %s86
      %s103 = sphi 0, %s87
      %s107 = sphi 0, %s107
      %s109 = sphi 0, %s107
      %s110 = sphi 0, %s109
      %s124 = sphi 0, %s110
      %s128 = sphi 0, %s128
      %s130 = sphi 0, %s128
      %s131 = sphi 0, %s130
      %s145 = sphi 0, %s131
      %s149 = sphi 0, %s149
      %s151 = sphi 0, %s149
      %s152 = sphi 0, %s151
      %s166 = sphi 0, %s152
      %s170 = sphi 0, %s170
      %s172 = sphi 0, %s170
      %s173 = sphi 0, %s172
      %s187 = sphi 0, %s173
      %s191 = sphi 0, %s191
      %s193 = sphi 0, %s191
      %s194 = sphi 0, %s193
      %s208 = sphi 0, %s194
      %s212 = sphi 0, %s212
      %s214 = sphi 0, %s212
      %s215 = sphi 0, %s214
      %s229 = sphi 0, %s215
      %s237 = sphi 0, %s239
      %s240 = sphi 0, %s237
      %s241 = sphi 0, %s240
      %s257 = sphi 0, %s241
    $region4: #{tpu_custom_call.1} parent=1 // loop_header_branch
      %27 = sbr.rel (%p25) target = $region8
    $region5: #{tpu_custom_call.1} parent=1 // loop_body
      %s29 = ssub.s32 %s24, 1
      %s30 = ssub.s32 %s24, 2
      %s40 = sadd.s32 1, %s33
      %p41 = scmp.ge.s32.totalorder %s40, 1
      %s42 = scalar_select %p41, 0, %s40
      %s43 = sadd.s32 1, %s32
      %s44 = scalar_select %p41, %s43, %s32
      %p45 = scmp.ge.s32.totalorder %s44, 1
      %s46 = scalar_select %p45, 0, %s44
      %s47 = sadd.s32 1, %s31
      %s48 = scalar_select %p45, %s47, %s31
      %p49 = scmp.ge.s32.totalorder %s48, 2
      %s50 = scalar_select %p49, 0, %s48
      %s51 = ssub.s32 %s31, %s50
      %s52 = ssub.s32 %s32, %s46
      %s53 = sor.u32 %s51, %s52
      %p54 = scmp.eq.s32.totalorder %s53, 0
      %s56 = sadd.s32 %s55, 1
      %s57 = scalar_select %p54, %s55, %s56
      %p60 = pneg %p54
      %p61 = scmp.eq.s32.totalorder %s24, 1
      %p62 = por %p60, %p61
      %p63 = scmp.ne.s32.totalorder %s55, %s58
      %p64 = scmp.eq.s32.totalorder %s24, 0
      %p65 = por %p63, %p64
      %p66 = scmp.ne.s32.totalorder %s55, %s58
      %p67 = scmp.eq.s32.totalorder %s29, 1
      %p68 = por %p66, %p67
      %p69 = scmp.ne.s32.totalorder %s58, %s59
      %p70 = scmp.eq.s32.totalorder %s29, 0
      %p71 = por %p69, %p70
      %p72 = scmp.ne.s32.totalorder %s58, %s59
      %p73 = scmp.eq.s32.totalorder %s30, 1
      %p74 = por %p72, %p73
      %p76 = scmp.ne.s32.totalorder %s59, %s75
      %p77 = scmp.eq.s32.totalorder %s30, 0
      %p78 = por %p76, %p77
      %s79 = ssub.s32 %s31, %s50
      %s80 = ssub.s32 %s33, %s42
      %s81 = sor.u32 %s79, %s80
      %p82 = scmp.eq.s32.totalorder %s81, 0
      %s84 = sadd.s32 %s83, 1
      %s85 = scalar_select %p82, %s83, %s84
      %p88 = pneg %p82
      %p89 = scmp.eq.s32.totalorder %s24, 1
      %p90 = por %p88, %p89
      %p91 = scmp.ne.s32.totalorder %s83, %s86
      %p92 = scmp.eq.s32.totalorder %s24, 0
      %p93 = por %p91, %p92
      %p94 = scmp.ne.s32.totalorder %s83, %s86
      %p95 = scmp.eq.s32.totalorder %s29, 1
      %p96 = por %p94, %p95
      %p97 = scmp.ne.s32.totalorder %s86, %s87
      %p98 = scmp.eq.s32.totalorder %s29, 0
      %p99 = por %p97, %p98
      %p100 = scmp.ne.s32.totalorder %s86, %s87
      %p101 = scmp.eq.s32.totalorder %s30, 1
      %p102 = por %p100, %p101
      %p104 = scmp.ne.s32.totalorder %s87, %s103
      %p105 = scmp.eq.s32.totalorder %s30, 0
      %p106 = por %p104, %p105
      %s108 = sadd.s32 %s107, 1
      %p111 = scmp.eq.s32.totalorder %s24, 1
      %p112 = scmp.ne.s32.totalorder %s107, %s109
      %p113 = scmp.eq.s32.totalorder %s24, 0
      %p114 = por %p112, %p113
      %p115 = scmp.ne.s32.totalorder %s107, %s109
      %p116 = scmp.eq.s32.totalorder %s29, 1
      %p117 = por %p115, %p116
      %p118 = scmp.ne.s32.totalorder %s109, %s110
      %p119 = scmp.eq.s32.totalorder %s29, 0
      %p120 = por %p118, %p119
      %p121 = scmp.ne.s32.totalorder %s109, %s110
      %p122 = scmp.eq.s32.totalorder %s30, 1
      %p123 = por %p121, %p122
      %p125 = scmp.ne.s32.totalorder %s110, %s124
      %p126 = scmp.eq.s32.totalorder %s30, 0
      %p127 = por %p125, %p126
      %s129 = sadd.s32 %s128, 1
      %p132 = scmp.eq.s32.totalorder %s24, 1
      %p133 = scmp.ne.s32.totalorder %s128, %s130
      %p134 = scmp.eq.s32.totalorder %s24, 0
      %p135 = por %p133, %p134
      %p136 = scmp.ne.s32.totalorder %s128, %s130
      %p137 = scmp.eq.s32.totalorder %s29, 1
      %p138 = por %p136, %p137
      %p139 = scmp.ne.s32.totalorder %s130, %s131
      %p140 = scmp.eq.s32.totalorder %s29, 0
      %p141 = por %p139, %p140
      %p142 = scmp.ne.s32.totalorder %s130, %s131
      %p143 = scmp.eq.s32.totalorder %s30, 1
      %p144 = por %p142, %p143
      %p146 = scmp.ne.s32.totalorder %s131, %s145
      %p147 = scmp.eq.s32.totalorder %s30, 0
      %p148 = por %p146, %p147
      %s150 = sadd.s32 %s149, 1
      %p153 = scmp.eq.s32.totalorder %s24, 1
      %p154 = scmp.ne.s32.totalorder %s149, %s151
      %p155 = scmp.eq.s32.totalorder %s24, 0
      %p156 = por %p154, %p155
      %p157 = scmp.ne.s32.totalorder %s149, %s151
      %p158 = scmp.eq.s32.totalorder %s29, 1
      %p159 = por %p157, %p158
      %p160 = scmp.ne.s32.totalorder %s151, %s152
      %p161 = scmp.eq.s32.totalorder %s29, 0
      %p162 = por %p160, %p161
      %p163 = scmp.ne.s32.totalorder %s151, %s152
      %p164 = scmp.eq.s32.totalorder %s30, 1
      %p165 = por %p163, %p164
      %p167 = scmp.ne.s32.totalorder %s152, %s166
      %p168 = scmp.eq.s32.totalorder %s30, 0
      %p169 = por %p167, %p168
      %s171 = sadd.s32 %s170, 1
      %p174 = scmp.eq.s32.totalorder %s24, 1
      %p175 = scmp.ne.s32.totalorder %s170, %s172
      %p176 = scmp.eq.s32.totalorder %s24, 0
      %p177 = por %p175, %p176
      %p178 = scmp.ne.s32.totalorder %s170, %s172
      %p179 = scmp.eq.s32.totalorder %s29, 1
      %p180 = por %p178, %p179
      %p181 = scmp.ne.s32.totalorder %s172, %s173
      %p182 = scmp.eq.s32.totalorder %s29, 0
      %p183 = por %p181, %p182
      %p184 = scmp.ne.s32.totalorder %s172, %s173
      %p185 = scmp.eq.s32.totalorder %s30, 1
      %p186 = por %p184, %p185
      %p188 = scmp.ne.s32.totalorder %s173, %s187
      %p189 = scmp.eq.s32.totalorder %s30, 0
      %p190 = por %p188, %p189
      %s192 = sadd.s32 %s191, 1
      %p195 = scmp.eq.s32.totalorder %s24, 1
      %p196 = scmp.ne.s32.totalorder %s191, %s193
      %p197 = scmp.eq.s32.totalorder %s24, 0
      %p198 = por %p196, %p197
      %p199 = scmp.ne.s32.totalorder %s191, %s193
      %p200 = scmp.eq.s32.totalorder %s29, 1
      %p201 = por %p199, %p200
      %p202 = scmp.ne.s32.totalorder %s193, %s194
      %p203 = scmp.eq.s32.totalorder %s29, 0
      %p204 = por %p202, %p203
      %p205 = scmp.ne.s32.totalorder %s193, %s194
      %p206 = scmp.eq.s32.totalorder %s30, 1
      %p207 = por %p205, %p206
      %p209 = scmp.ne.s32.totalorder %s194, %s208
      %p210 = scmp.eq.s32.totalorder %s30, 0
      %p211 = por %p209, %p210
      %s213 = sadd.s32 %s212, 1
      %p216 = scmp.eq.s32.totalorder %s24, 1
      %p217 = scmp.ne.s32.totalorder %s212, %s214
      %p218 = scmp.eq.s32.totalorder %s24, 0
      %p219 = por %p217, %p218
      %p220 = scmp.ne.s32.totalorder %s212, %s214
      %p221 = scmp.eq.s32.totalorder %s29, 1
      %p222 = por %p220, %p221
      %p223 = scmp.ne.s32.totalorder %s214, %s215
      %p224 = scmp.eq.s32.totalorder %s29, 0
      %p225 = por %p223, %p224
      %p226 = scmp.ne.s32.totalorder %s214, %s215
      %p227 = scmp.eq.s32.totalorder %s30, 1
      %p228 = por %p226, %p227
      %p230 = scmp.ne.s32.totalorder %s215, %s229
      %p231 = scmp.eq.s32.totalorder %s30, 0
      %p232 = por %p230, %p231
      %s233 = ssub.s32 %s31, %s50
      %s234 = ssub.s32 %s32, %s46
      %s235 = sor.u32 %s233, %s234
      %p236 = scmp.eq.s32.totalorder %s235, 0
      %s238 = sadd.s32 %s237, 1
      %s239 = scalar_select %p236, %s237, %s238
      %p242 = pneg %p236
      %p243 = scmp.eq.s32.totalorder %s24, 1
      %p244 = por %p242, %p243
      %p245 = scmp.ne.s32.totalorder %s237, %s240
      %p246 = scmp.eq.s32.totalorder %s24, 0
      %p247 = por %p245, %p246
      %p248 = scmp.ne.s32.totalorder %s237, %s240
      %p249 = scmp.eq.s32.totalorder %s29, 1
      %p250 = por %p248, %p249
      %p251 = scmp.ne.s32.totalorder %s240, %s241
      %p252 = scmp.eq.s32.totalorder %s29, 0
      %p253 = por %p251, %p252
      %p254 = scmp.ne.s32.totalorder %s240, %s241
      %p255 = scmp.eq.s32.totalorder %s30, 1
      %p256 = por %p254, %p255
      %p258 = scmp.ne.s32.totalorder %s241, %s257
      %p259 = scmp.eq.s32.totalorder %s30, 0
      %p260 = por %p258, %p259
      %p261 = scmp.le.s32.totalorder 1, %s24
      %p262 = scmp.lt.s32.totalorder %s24, 3
      %p263 = pnand %p261, %p262
      %p264 = pneg %p263
      // Predicated region
      $region9: #{tpu_custom_call.1} parent=5 // pred_check
        _
      $region10: #{tpu_custom_call.1} parent=5 // pred_check_branch
        %266 = sbr.rel (%p263) target = $region12
      $region11: #{tpu_custom_call.1} parent=5 // pred_region
        %s267 = ssub.s32 %s24, 1
        // Predicated region
        $region13: #{tpu_custom_call.1} parent=11 // pred_check
          %p268 = pneg %p120
        $region14: #{tpu_custom_call.1} parent=11 // pred_check_branch
          %270 = sbr.rel (%p268) target = $region16
        $region15: #{tpu_custom_call.1} parent=11 // pred_region
          %s272 = ssub.s32 512, 512
          %273 = vsyncadd [#allocation10], %s272
          %s274 = sshll.u32 [#allocation11], 4
          %s275 = int_to_ptr.vmem [resolvable:$true] %s274
          %280 = dma.hbm_to_vmem [thread:$0]  %s2, 512, %s275, [#allocation10], 128, 128, 8
        $region16: #{tpu_custom_call.1} parent=11 // pred_fallthru
          _
        // Predicated region
        $region17: #{tpu_custom_call.1} parent=11 // pred_check
          %p281 = pneg %p141
        $region18: #{tpu_custom_call.1} parent=11 // pred_check_branch
          %283 = sbr.rel (%p281) target = $region20
        $region19: #{tpu_custom_call.1} parent=11 // pred_region
          _
        $region20: #{tpu_custom_call.1} parent=11 // pred_fallthru
          _
        // Predicated region
        $region21: #{tpu_custom_call.1} parent=11 // pred_check
          %p284 = pneg %p162
        $region22: #{tpu_custom_call.1} parent=11 // pred_check_branch
          %286 = sbr.rel (%p284) target = $region24
        $region23: #{tpu_custom_call.1} parent=11 // pred_region
          %s288 = ssub.s32 512, 512
          %289 = vsyncadd [#allocation13], %s288
          %s290 = sshll.u32 [#allocation12], 4
          %s291 = int_to_ptr.vmem [resolvable:$true] %s290
          %296 = dma.hbm_to_vmem [thread:$0]  %s4, 512, %s291, [#allocation13], 128, 128, 8
        $region24: #{tpu_custom_call.1} parent=11 // pred_fallthru
          _
        // Predicated region
        $region25: #{tpu_custom_call.1} parent=11 // pred_check
          %p297 = pneg %p183
        $region26: #{tpu_custom_call.1} parent=11 // pred_check_branch
          %299 = sbr.rel (%p297) target = $region28
        $region27: #{tpu_custom_call.1} parent=11 // pred_region
          _
        $region28: #{tpu_custom_call.1} parent=11 // pred_fallthru
          _
        // Predicated region
        $region29: #{tpu_custom_call.1} parent=11 // pred_check
          %p300 = pneg %p204
        $region30: #{tpu_custom_call.1} parent=11 // pred_check_branch
          %302 = sbr.rel (%p300) target = $region32
        $region31: #{tpu_custom_call.1} parent=11 // pred_region
          %s304 = ssub.s32 512, 512
          %305 = vsyncadd [#allocation13], %s304
          %s306 = sshll.u32 [#allocation14], 4
          %s307 = int_to_ptr.vmem [resolvable:$true] %s306
          %312 = dma.hbm_to_vmem [thread:$0]  %s6, 512, %s307, [#allocation13], 128, 128, 8
        $region32: #{tpu_custom_call.1} parent=11 // pred_fallthru
          _
        // Predicated region
        $region33: #{tpu_custom_call.1} parent=11 // pred_check
          %p313 = pneg %p225
        $region34: #{tpu_custom_call.1} parent=11 // pred_check_branch
          %315 = sbr.rel (%p313) target = $region36
        $region35: #{tpu_custom_call.1} parent=11 // pred_region
          _
        $region36: #{tpu_custom_call.1} parent=11 // pred_fallthru
          _
      $region12: #{tpu_custom_call.1} parent=5 // pred_fallthru
        _
      %p316 = scmp.lt.s32.totalorder %s24, 2
      // Predicated region
      $region37: #{tpu_custom_call.1} parent=5 // pred_check
        %p317 = pneg %p316
      $region38: #{tpu_custom_call.1} parent=5 // pred_check_branch
        %319 = sbr.rel (%p317) target = $region40
      $region39: #{tpu_custom_call.1} parent=5 // pred_region
        // Predicated region
        $region41: #{tpu_custom_call.1} parent=39 // pred_check
          %p320 = pneg %p65
        $region42: #{tpu_custom_call.1} parent=39 // pred_check_branch
          %322 = sbr.rel (%p320) target = $region44
        $region43: #{tpu_custom_call.1} parent=39 // pred_region
          %s323 = sand.u32 %s55, 1
          %s324 = scalar_lea.sflag [#allocation7], %s323
          %s325 = sand.u32 %s55, 1
          %s326 = smul.addr %s325, 8
          %s327 = scalar_lea.vmem [#allocation6], %s326
          %s329 = ssub.s32 128, 128
          %330 = vsyncadd %s324, %s329
          %s331 = sadd.s32 %s32, %s31
          %s332 = smul.addr %s331, 128
          %s333 = scalar_lea.hbm %s0, %s332
          %s335 = sshll.u32 %s327, 4
          %s336 = int_to_ptr.vmem [resolvable:$true] %s335
          %338 = dma.hbm_to_vmem [thread:$0]  %s333, 128, %s336, %s324
        $region44: #{tpu_custom_call.1} parent=39 // pred_fallthru
          _
        // Predicated region
        $region45: #{tpu_custom_call.1} parent=39 // pred_check
          %p339 = pneg %p93
        $region46: #{tpu_custom_call.1} parent=39 // pred_check_branch
          %341 = sbr.rel (%p339) target = $region48
        $region47: #{tpu_custom_call.1} parent=39 // pred_region
          %s342 = sand.u32 %s24, 1
          %s343 = scalar_lea.sflag [#allocation10], %s342
          %s344 = sand.u32 %s83, 1
          %s345 = smul.addr %s344, 8
          %s346 = scalar_lea.vmem [#allocation9], %s345
          %s348 = ssub.s32 128, 128
          %349 = vsyncadd %s343, %s348
          %s350 = sadd.s32 %s33, %s31
          %s351 = smul.addr %s350, 128
          %s352 = scalar_lea.hbm %s1, %s351
          %s354 = sshll.u32 %s346, 4
          %s355 = int_to_ptr.vmem [resolvable:$true] %s354
          %357 = dma.hbm_to_vmem [thread:$0]  %s352, 128, %s355, %s343
        $region48: #{tpu_custom_call.1} parent=39 // pred_fallthru
          _
      $region40: #{tpu_custom_call.1} parent=5 // pred_fallthru
        _
      %p358 = scmp.le.s32.totalorder 1, %s24
      %p359 = scmp.lt.s32.totalorder %s24, 3
      %p360 = pnand %p358, %p359
      %p361 = pneg %p360
      // Predicated region
      $region49: #{tpu_custom_call.1} parent=5 // pred_check
        _
      $region50: #{tpu_custom_call.1} parent=5 // pred_check_branch
        %363 = sbr.rel (%p360) target = $region52
      $region51: #{tpu_custom_call.1} parent=5 // pred_region
        %s364 = ssub.s32 %s24, 1
        %s365 = sand.u32 %s58, 1
        %s366 = scalar_lea.sflag [#allocation7], %s365
        %s367 = sand.u32 %s58, 1
        %s368 = smul.addr %s367, 8
        %s369 = scalar_lea.vmem [#allocation6], %s368
        // Predicated region
        $region53: #{tpu_custom_call.1} parent=51 // pred_check
          %p370 = pneg %p71
        $region54: #{tpu_custom_call.1} parent=51 // pred_check_branch
          %372 = sbr.rel (%p370) target = $region56
        $region55: #{tpu_custom_call.1} parent=51 // pred_region
          %373 = dma.done %s366, 128
        $region56: #{tpu_custom_call.1} parent=51 // pred_fallthru
          _
        %s374 = sand.u32 %s29, 1
        %s375 = scalar_lea.sflag [#allocation10], %s374
        %s376 = sand.u32 %s86, 1
        %s377 = smul.addr %s376, 8
        %s378 = scalar_lea.vmem [#allocation9], %s377
        // Predicated region
        $region57: #{tpu_custom_call.1} parent=51 // pred_check
          %p379 = pneg %p99
        $region58: #{tpu_custom_call.1} parent=51 // pred_check_branch
          %381 = sbr.rel (%p379) target = $region60
        $region59: #{tpu_custom_call.1} parent=51 // pred_region
          %382 = dma.done %s375, 128
        $region60: #{tpu_custom_call.1} parent=51 // pred_fallthru
          _
        // Predicated region
        $region61: #{tpu_custom_call.1} parent=51 // pred_check
          %p383 = pneg %p120
        $region62: #{tpu_custom_call.1} parent=51 // pred_check_branch
          %385 = sbr.rel (%p383) target = $region64
        $region63: #{tpu_custom_call.1} parent=51 // pred_region
          %386 = dma.done [#allocation10], 512
        $region64: #{tpu_custom_call.1} parent=51 // pred_fallthru
          _
        // Predicated region
        $region65: #{tpu_custom_call.1} parent=51 // pred_check
          %p387 = pneg %p162
        $region66: #{tpu_custom_call.1} parent=51 // pred_check_branch
          %389 = sbr.rel (%p387) target = $region68
        $region67: #{tpu_custom_call.1} parent=51 // pred_region
          %390 = dma.done [#allocation13], 512
        $region68: #{tpu_custom_call.1} parent=51 // pred_fallthru
          _
        // Predicated region
        $region69: #{tpu_custom_call.1} parent=51 // pred_check
          %p391 = pneg %p204
        $region70: #{tpu_custom_call.1} parent=51 // pred_check_branch
          %393 = sbr.rel (%p391) target = $region72
        $region71: #{tpu_custom_call.1} parent=51 // pred_region
          %394 = dma.done [#allocation13], 512
        $region72: #{tpu_custom_call.1} parent=51 // pred_fallthru
          _
        %s395 = sand.u32 %s58, 1
        %s396 = scalar_lea.sflag [#allocation7], %s395
        %s397 = sand.u32 %s58, 1
        %s398 = smul.addr %s397, 8
        %s399 = scalar_lea.vmem [#allocation6], %s398
        %p400 = pneg %p71
        %p401 = pneg %p68
        %s402 = sand.u32 %s29, 1
        %s403 = scalar_lea.sflag [#allocation10], %s402
        %s404 = sand.u32 %s86, 1
        %s405 = smul.addr %s404, 8
        %s406 = scalar_lea.vmem [#allocation9], %s405
        %p407 = pneg %p99
        %p408 = pneg %p96
        %p409 = pneg %p120
        %p410 = pneg %p117
        %p411 = pneg %p141
        %p412 = pneg %p138
        %p413 = pneg %p162
        %p414 = pneg %p159
        %p415 = pneg %p183
        %p416 = pneg %p180
        %p417 = pneg %p204
        %p418 = pneg %p201
        %p419 = pneg %p225
        %p420 = pneg %p222
        %p421 = pneg %p253
        %p422 = pneg %p250
        %s423 = sand.u32 %s240, 1
        %s424 = scalar_lea.sflag [#allocation8], %s423
        %s425 = sand.u32 %s240, 1
        %s426 = smul.addr %s425, 8
        %s427 = scalar_lea.vmem [#allocation15], %s426
        %p428 = scmp.eq.s32.totalorder %s36, 0
        // Predicated region
        $region73: #{tpu_custom_call.1} parent=51 // pred_check
          %p429 = pneg %p428
        $region74: #{tpu_custom_call.1} parent=51 // pred_check_branch
          %431 = sbr.rel (%p429) target = $region76
        $region75: #{tpu_custom_call.1} parent=51 // pred_region
          %vm432 = vcmask 7168
          %433 = vst.msk [vmem:[#allocation3] sm:$0xff] %vm432, -inf
          %434 = vst.msk [vmem:[#allocation3 + $0x8] sm:$0xff] %vm432, -inf
          %435 = vst.msk [vmem:[#allocation4] sm:$0xff] %vm432, 0.0
          %436 = vst.msk [vmem:[#allocation4 + $0x8] sm:$0xff] %vm432, 0.0
          %vm437 = vcmask 130048
          %438 = vst.msk [vmem:[#allocation5] sm:$0xff] %vm437, 0.0
          %439 = vst.msk [vmem:[#allocation5 + $0x8] sm:$0xff] %vm437, 0.0
          %v440 = vld [vmem:[%s369] sm:$0xff]
          %v441 = vld [vmem:[#allocation11] sm:$0xff]
          %v442 = vld [vmem:[#allocation11 + $0x8] sm:$0xff]
          %v443 = vld [vmem:[%s3] sm:$0x1]
          %v445 = vlaneseq
          %v446 = vshrl.u32 %v445, 7
          %v447 = vsub.s32 0, %v446
          %v448 = vrot.slane %v443, %v447
          %v451 = vsel %vm437, %v440, 0
          %453 = vmatprep.subr.mxu0 0.0
          %454 = vmatpush1.msra.mxu0 %v441
          %455 = vmatprep.subr.mxu0 0.0
          %456 = vmatpush1.msra.mxu0 %v442
          %457 = vmatprep.subr.mxu0 0.0
          %458 = vmatpush1.msra.mxu0 0.0
          %459 = vmatprep.subr.mxu0 0.0
          %460 = vmatpush1.msra.mxu0 0.0
          %461 = vmatprep.subr.mxu0 0.0
          %462 = vmatpush1.msra.mxu0 0.0
          %463 = vmatprep.subr.mxu0 0.0
          %464 = vmatpush1.msra.mxu0 0.0
          %465 = vmatprep.subr.mxu0 0.0
          %466 = vmatpush1.msra.mxu0 0.0
          %467 = vmatprep.subr.mxu0 0.0
          %468 = vmatpush1.msra.mxu0 0.0
          %469 = vmatprep.subr.mxu0 0.0
          %470 = vmatpush1.msra.mxu0 0.0
          %471 = vmatprep.subr.mxu0 0.0
          %472 = vmatpush1.msra.mxu0 0.0
          %473 = vmatprep.subr.mxu0 0.0
          %474 = vmatpush1.msra.mxu0 0.0
          %475 = vmatprep.subr.mxu0 0.0
          %476 = vmatpush1.msra.mxu0 0.0
          %477 = vmatprep.subr.mxu0 0.0
          %478 = vmatpush1.msra.mxu0 0.0
          %479 = vmatprep.subr.mxu0 0.0
          %480 = vmatpush1.msra.mxu0 0.0
          %481 = vmatprep.subr.mxu0 0.0
          %482 = vmatpush1.msra.mxu0 0.0
          %483 = vmatprep.subr.mxu0 0.0
          %484 = vmatpush1.msra.mxu0 0.0
          %485 = vmatprep.subr.mxu0 0.0
          %486 = vmatpush1.msra.mxu0 0.0
          %487 = vmatprep.subr.mxu0 0.0
          %488 = vmatpush1.msra.mxu0 0.0
          %489 = vmatprep.subr.mxu0 0.0
          %490 = vmatpush1.msra.mxu0 0.0
          %491 = vmatprep.subr.mxu0 0.0
          %492 = vmatpush1.msra.mxu0 0.0
          %493 = vmatprep.subr.mxu0 0.0
          %494 = vmatpush1.msra.mxu0 0.0
          %495 = vmatprep.subr.mxu0 0.0
          %496 = vmatpush1.msra.mxu0 0.0
          %497 = vmatprep.subr.mxu0 0.0
          %498 = vmatpush1.msra.mxu0 0.0
          %499 = vmatprep.subr.mxu0 0.0
          %500 = vmatpush1.msra.mxu0 0.0
          %501 = vmatprep.subr.mxu0 0.0
          %502 = vmatpush1.msra.mxu0 0.0
          %503 = vmatprep.subr.mxu0 0.0
          %504 = vmatpush1.msra.mxu0 0.0
          %505 = vmatprep.subr.mxu0 0.0
          %506 = vmatpush1.msra.mxu0 0.0
          %507 = vmatprep.subr.mxu0 0.0
          %508 = vmatpush1.msra.mxu0 0.0
          %509 = vmatprep.subr.mxu0 0.0
          %510 = vmatpush1.msra.mxu0 0.0
          %511 = vmatprep.subr.mxu0 0.0
          %512 = vmatpush1.msra.mxu0 0.0
          %513 = vmatprep.subr.mxu0 0.0
          %514 = vmatpush1.msra.mxu0 0.0
          %515 = vmatprep.subr.mxu0 0.0
          %516 = vmatpush1.msra.mxu0 0.0
          %517 = vmatprep.mubr.f32.mxu0 0.0
          %518 = vmatmul.mubr.f32.gmra.mrb[0].mxu0 %v451
          %v519 = vpop.f32.mrb[0].mxu0
          %v520 = vadd.f32 %v448, %v519
          %v521 = vpop.f32.mrb[0].mxu0
          %522 = vdwg.mxu0
          %523 = vst.msk [vmem:[#allocation2] sm:$0xff] %vm437, %v520
          %s524 = scalar_lea.vmem [#allocation11], 16
          %v525 = vld [vmem:[%s524] sm:$0xff]
          %v526 = vld [vmem:[%s524 + $0x8] sm:$0xff]
          %s527 = scalar_lea.vmem %s3, 1
          %v528 = vld [vmem:[%s527] sm:$0x1]
          %v530 = vlaneseq
          %v531 = vshrl.u32 %v530, 7
          %v532 = vsub.s32 0, %v531
          %v533 = vrot.slane %v528, %v532
          %535 = vrot.lane.b32.xlu0 %v440, 112
          %v536 = vpop.permute.xlu0 %535
          %v537 = vsel %vm437, %v536, 0
          %539 = vmatprep.subr.mxu0 0.0
          %540 = vmatpush1.msra.mxu0 %v525
          %541 = vmatprep.subr.mxu0 0.0
          %542 = vmatpush1.msra.mxu0 %v526
          %543 = vmatprep.subr.mxu0 0.0
          %544 = vmatpush1.msra.mxu0 0.0
          %545 = vmatprep.subr.mxu0 0.0
          %546 = vmatpush1.msra.mxu0 0.0
          %547 = vmatprep.subr.mxu0 0.0
          %548 = vmatpush1.msra.mxu0 0.0
          %549 = vmatprep.subr.mxu0 0.0
          %550 = vmatpush1.msra.mxu0 0.0
          %551 = vmatprep.subr.mxu0 0.0
          %552 = vmatpush1.msra.mxu0 0.0
          %553 = vmatprep.subr.mxu0 0.0
          %554 = vmatpush1.msra.mxu0 0.0
          %555 = vmatprep.subr.mxu0 0.0
          %556 = vmatpush1.msra.mxu0 0.0
          %557 = vmatprep.subr.mxu0 0.0
          %558 = vmatpush1.msra.mxu0 0.0
          %559 = vmatprep.subr.mxu0 0.0
          %560 = vmatpush1.msra.mxu0 0.0
          %561 = vmatprep.subr.mxu0 0.0
          %562 = vmatpush1.msra.mxu0 0.0
          %563 = vmatprep.subr.mxu0 0.0
          %564 = vmatpush1.msra.mxu0 0.0
          %565 = vmatprep.subr.mxu0 0.0
          %566 = vmatpush1.msra.mxu0 0.0
          %567 = vmatprep.subr.mxu0 0.0
          %568 = vmatpush1.msra.mxu0 0.0
          %569 = vmatprep.subr.mxu0 0.0
          %570 = vmatpush1.msra.mxu0 0.0
          %571 = vmatprep.subr.mxu0 0.0
          %572 = vmatpush1.msra.mxu0 0.0
          %573 = vmatprep.subr.mxu0 0.0
          %574 = vmatpush1.msra.mxu0 0.0
          %575 = vmatprep.subr.mxu0 0.0
          %576 = vmatpush1.msra.mxu0 0.0
          %577 = vmatprep.subr.mxu0 0.0
          %578 = vmatpush1.msra.mxu0 0.0
          %579 = vmatprep.subr.mxu0 0.0
          %580 = vmatpush1.msra.mxu0 0.0
          %581 = vmatprep.subr.mxu0 0.0
          %582 = vmatpush1.msra.mxu0 0.0
          %583 = vmatprep.subr.mxu0 0.0
          %584 = vmatpush1.msra.mxu0 0.0
          %585 = vmatprep.subr.mxu0 0.0
          %586 = vmatpush1.msra.mxu0 0.0
          %587 = vmatprep.subr.mxu0 0.0
          %588 = vmatpush1.msra.mxu0 0.0
          %589 = vmatprep.subr.mxu0 0.0
          %590 = vmatpush1.msra.mxu0 0.0
          %591 = vmatprep.subr.mxu0 0.0
          %592 = vmatpush1.msra.mxu0 0.0
          %593 = vmatprep.subr.mxu0 0.0
          %594 = vmatpush1.msra.mxu0 0.0
          %595 = vmatprep.subr.mxu0 0.0
          %596 = vmatpush1.msra.mxu0 0.0
          %597 = vmatprep.subr.mxu0 0.0
          %598 = vmatpush1.msra.mxu0 0.0
          %599 = vmatprep.subr.mxu0 0.0
          %600 = vmatpush1.msra.mxu0 0.0
          %601 = vmatprep.subr.mxu0 0.0
          %602 = vmatpush1.msra.mxu0 0.0
          %603 = vmatprep.mubr.f32.mxu0 0.0
          %604 = vmatmul.mubr.f32.gmra.mrb[0].mxu0 %v537
          %v605 = vpop.f32.mrb[0].mxu0
          %v606 = vadd.f32 %v533, %v605
          %v607 = vpop.f32.mrb[0].mxu0
          %608 = vdwg.mxu0
          %s609 = scalar_lea.vmem [#allocation2], 8
          %610 = vst.msk [vmem:[%s609] sm:$0xff] %vm437, %v606
        $region76: #{tpu_custom_call.1} parent=51 // pred_fallthru
          _
        %v611 = vld [vmem:[%s378] sm:$0xff]
        %v612 = vld [vmem:[#allocation12] sm:$0xff]
        %v613 = vld [vmem:[#allocation12 + $0x8] sm:$0xff]
        %v614 = vld [vmem:[%s5] sm:$0x1]
        %v616 = vlaneseq
        %v617 = vshrl.u32 %v616, 7
        %v618 = vsub.s32 0, %v617
        %v619 = vrot.slane %v614, %v618
        %vm621 = vcmask 130048
        %v623 = vsel %vm621, %v611, 0
        %625 = vmatprep.subr.mxu0 0.0
        %626 = vmatpush1.msra.mxu0 %v612
        %627 = vmatprep.subr.mxu0 0.0
        %628 = vmatpush1.msra.mxu0 %v613
        %629 = vmatprep.subr.mxu0 0.0
        %630 = vmatpush1.msra.mxu0 0.0
        %631 = vmatprep.subr.mxu0 0.0
        %632 = vmatpush1.msra.mxu0 0.0
        %633 = vmatprep.subr.mxu0 0.0
        %634 = vmatpush1.msra.mxu0 0.0
        %635 = vmatprep.subr.mxu0 0.0
        %636 = vmatpush1.msra.mxu0 0.0
        %637 = vmatprep.subr.mxu0 0.0
        %638 = vmatpush1.msra.mxu0 0.0
        %639 = vmatprep.subr.mxu0 0.0
        %640 = vmatpush1.msra.mxu0 0.0
        %641 = vmatprep.subr.mxu0 0.0
        %642 = vmatpush1.msra.mxu0 0.0
        %643 = vmatprep.subr.mxu0 0.0
        %644 = vmatpush1.msra.mxu0 0.0
        %645 = vmatprep.subr.mxu0 0.0
        %646 = vmatpush1.msra.mxu0 0.0
        %647 = vmatprep.subr.mxu0 0.0
        %648 = vmatpush1.msra.mxu0 0.0
        %649 = vmatprep.subr.mxu0 0.0
        %650 = vmatpush1.msra.mxu0 0.0
        %651 = vmatprep.subr.mxu0 0.0
        %652 = vmatpush1.msra.mxu0 0.0
        %653 = vmatprep.subr.mxu0 0.0
        %654 = vmatpush1.msra.mxu0 0.0
        %655 = vmatprep.subr.mxu0 0.0
        %656 = vmatpush1.msra.mxu0 0.0
        %657 = vmatprep.subr.mxu0 0.0
        %658 = vmatpush1.msra.mxu0 0.0
        %659 = vmatprep.subr.mxu0 0.0
        %660 = vmatpush1.msra.mxu0 0.0
        %661 = vmatprep.subr.mxu0 0.0
        %662 = vmatpush1.msra.mxu0 0.0
        %663 = vmatprep.subr.mxu0 0.0
        %664 = vmatpush1.msra.mxu0 0.0
        %665 = vmatprep.subr.mxu0 0.0
        %666 = vmatpush1.msra.mxu0 0.0
        %667 = vmatprep.subr.mxu0 0.0
        %668 = vmatpush1.msra.mxu0 0.0
        %669 = vmatprep.subr.mxu0 0.0
        %670 = vmatpush1.msra.mxu0 0.0
        %671 = vmatprep.subr.mxu0 0.0
        %672 = vmatpush1.msra.mxu0 0.0
        %673 = vmatprep.subr.mxu0 0.0
        %674 = vmatpush1.msra.mxu0 0.0
        %675 = vmatprep.subr.mxu0 0.0
        %676 = vmatpush1.msra.mxu0 0.0
        %677 = vmatprep.subr.mxu0 0.0
        %678 = vmatpush1.msra.mxu0 0.0
        %679 = vmatprep.subr.mxu0 0.0
        %680 = vmatpush1.msra.mxu0 0.0
        %681 = vmatprep.subr.mxu0 0.0
        %682 = vmatpush1.msra.mxu0 0.0
        %683 = vmatprep.subr.mxu0 0.0
        %684 = vmatpush1.msra.mxu0 0.0
        %685 = vmatprep.subr.mxu0 0.0
        %686 = vmatpush1.msra.mxu0 0.0
        %687 = vmatprep.subr.mxu0 0.0
        %688 = vmatpush1.msra.mxu0 0.0
        %689 = vmatprep.mubr.f32.mxu0 0.0
        %690 = vmatmul.mubr.f32.gmra.mrb[0].mxu0 %v623
        %v691 = vpop.f32.mrb[0].mxu0
        %v692 = vadd.f32 %v619, %v691
        %v693 = vpop.f32.mrb[0].mxu0
        %694 = vdwg.mxu0
        %v695 = vld [vmem:[#allocation14] sm:$0xff]
        %v696 = vld [vmem:[#allocation14 + $0x8] sm:$0xff]
        %v697 = vld [vmem:[%s7] sm:$0x1]
        %v699 = vlaneseq
        %v700 = vshrl.u32 %v699, 7
        %v701 = vsub.s32 0, %v700
        %v702 = vrot.slane %v697, %v701
        %704 = vmatprep.subr.mxu0 0.0
        %705 = vmatpush1.msra.mxu0 %v695
        %706 = vmatprep.subr.mxu0 0.0
        %707 = vmatpush1.msra.mxu0 %v696
        %708 = vmatprep.subr.mxu0 0.0
        %709 = vmatpush1.msra.mxu0 0.0
        %710 = vmatprep.subr.mxu0 0.0
        %711 = vmatpush1.msra.mxu0 0.0
        %712 = vmatprep.subr.mxu0 0.0
        %713 = vmatpush1.msra.mxu0 0.0
        %714 = vmatprep.subr.mxu0 0.0
        %715 = vmatpush1.msra.mxu0 0.0
        %716 = vmatprep.subr.mxu0 0.0
        %717 = vmatpush1.msra.mxu0 0.0
        %718 = vmatprep.subr.mxu0 0.0
        %719 = vmatpush1.msra.mxu0 0.0
        %720 = vmatprep.subr.mxu0 0.0
        %721 = vmatpush1.msra.mxu0 0.0
        %722 = vmatprep.subr.mxu0 0.0
        %723 = vmatpush1.msra.mxu0 0.0
        %724 = vmatprep.subr.mxu0 0.0
        %725 = vmatpush1.msra.mxu0 0.0
        %726 = vmatprep.subr.mxu0 0.0
        %727 = vmatpush1.msra.mxu0 0.0
        %728 = vmatprep.subr.mxu0 0.0
        %729 = vmatpush1.msra.mxu0 0.0
        %730 = vmatprep.subr.mxu0 0.0
        %731 = vmatpush1.msra.mxu0 0.0
        %732 = vmatprep.subr.mxu0 0.0
        %733 = vmatpush1.msra.mxu0 0.0
        %734 = vmatprep.subr.mxu0 0.0
        %735 = vmatpush1.msra.mxu0 0.0
        %736 = vmatprep.subr.mxu0 0.0
        %737 = vmatpush1.msra.mxu0 0.0
        %738 = vmatprep.subr.mxu0 0.0
        %739 = vmatpush1.msra.mxu0 0.0
        %740 = vmatprep.subr.mxu0 0.0
        %741 = vmatpush1.msra.mxu0 0.0
        %742 = vmatprep.subr.mxu0 0.0
        %743 = vmatpush1.msra.mxu0 0.0
        %744 = vmatprep.subr.mxu0 0.0
        %745 = vmatpush1.msra.mxu0 0.0
        %746 = vmatprep.subr.mxu0 0.0
        %747 = vmatpush1.msra.mxu0 0.0
        %748 = vmatprep.subr.mxu0 0.0
        %749 = vmatpush1.msra.mxu0 0.0
        %750 = vmatprep.subr.mxu0 0.0
        %751 = vmatpush1.msra.mxu0 0.0
        %752 = vmatprep.subr.mxu0 0.0
        %753 = vmatpush1.msra.mxu0 0.0
        %754 = vmatprep.subr.mxu0 0.0
        %755 = vmatpush1.msra.mxu0 0.0
        %756 = vmatprep.subr.mxu0 0.0
        %757 = vmatpush1.msra.mxu0 0.0
        %758 = vmatprep.subr.mxu0 0.0
        %759 = vmatpush1.msra.mxu0 0.0
        %760 = vmatprep.subr.mxu0 0.0
        %761 = vmatpush1.msra.mxu0 0.0
        %762 = vmatprep.subr.mxu0 0.0
        %763 = vmatpush1.msra.mxu0 0.0
        %764 = vmatprep.subr.mxu0 0.0
        %765 = vmatpush1.msra.mxu0 0.0
        %766 = vmatprep.subr.mxu0 0.0
        %767 = vmatpush1.msra.mxu0 0.0
        %768 = vmatprep.mubr.f32.mxu0 0.0
        %769 = vmatmul.mubr.f32.gmra.mrb[0].mxu0 %v623
        %v770 = vpop.f32.mrb[0].mxu0
        %v771 = vadd.f32 %v702, %v770
        %v772 = vpop.f32.mrb[0].mxu0
        %773 = vdwg.mxu0
        %v774 = vld [vmem:[#allocation2] sm:$0xff]
        %v776 = vsel %vm621, %v774, 0
        %v779 = vsel %vm621, %v692, 0
        %781 = vmatprep.subr.mxu0 0.0
        %782 = vmatpush1.xpose.msra.mxu0 %v779
        %783 = vmatprep.subr.mxu0 0.0
        %784 = vmatpush1.xpose.msra.mxu0 0.0
        %785 = vmatprep.subr.mxu0 0.0
        %786 = vmatpush1.xpose.msra.mxu0 0.0
        %787 = vmatprep.subr.mxu0 0.0
        %788 = vmatpush1.xpose.msra.mxu0 0.0
        %789 = vmatprep.subr.mxu0 0.0
        %790 = vmatpush1.xpose.msra.mxu0 0.0
        %791 = vmatprep.subr.mxu0 0.0
        %792 = vmatpush1.xpose.msra.mxu0 0.0
        %793 = vmatprep.subr.mxu0 0.0
        %794 = vmatpush1.xpose.msra.mxu0 0.0
        %795 = vmatprep.subr.mxu0 0.0
        %796 = vmatpush1.xpose.msra.mxu0 0.0
        %797 = vmatprep.subr.mxu0 0.0
        %798 = vmatpush1.xpose.msra.mxu0 0.0
        %799 = vmatprep.subr.mxu0 0.0
        %800 = vmatpush1.xpose.msra.mxu0 0.0
        %801 = vmatprep.subr.mxu0 0.0
        %802 = vmatpush1.xpose.msra.mxu0 0.0
        %803 = vmatprep.subr.mxu0 0.0
        %804 = vmatpush1.xpose.msra.mxu0 0.0
        %805 = vmatprep.subr.mxu0 0.0
        %806 = vmatpush1.xpose.msra.mxu0 0.0
        %807 = vmatprep.subr.mxu0 0.0
        %808 = vmatpush1.xpose.msra.mxu0 0.0
        %809 = vmatprep.subr.mxu0 0.0
        %810 = vmatpush1.xpose.msra.mxu0 0.0
        %811 = vmatprep.subr.mxu0 0.0
        %812 = vmatpush1.xpose.msra.mxu0 0.0
        %813 = vmatprep.subr.mxu0 0.0
        %814 = vmatpush1.xpose.msra.mxu0 0.0
        %815 = vmatprep.subr.mxu0 0.0
        %816 = vmatpush1.xpose.msra.mxu0 0.0
        %817 = vmatprep.subr.mxu0 0.0
        %818 = vmatpush1.xpose.msra.mxu0 0.0
        %819 = vmatprep.subr.mxu0 0.0
        %820 = vmatpush1.xpose.msra.mxu0 0.0
        %821 = vmatprep.subr.mxu0 0.0
        %822 = vmatpush1.xpose.msra.mxu0 0.0
        %823 = vmatprep.subr.mxu0 0.0
        %824 = vmatpush1.xpose.msra.mxu0 0.0
        %825 = vmatprep.subr.mxu0 0.0
        %826 = vmatpush1.xpose.msra.mxu0 0.0
        %827 = vmatprep.subr.mxu0 0.0
        %828 = vmatpush1.xpose.msra.mxu0 0.0
        %829 = vmatprep.subr.mxu0 0.0
        %830 = vmatpush1.xpose.msra.mxu0 0.0
        %831 = vmatprep.subr.mxu0 0.0
        %832 = vmatpush1.xpose.msra.mxu0 0.0
        %833 = vmatprep.subr.mxu0 0.0
        %834 = vmatpush1.xpose.msra.mxu0 0.0
        %835 = vmatprep.subr.mxu0 0.0
        %836 = vmatpush1.xpose.msra.mxu0 0.0
        %837 = vmatprep.subr.mxu0 0.0
        %838 = vmatpush1.xpose.msra.mxu0 0.0
        %839 = vmatprep.subr.mxu0 0.0
        %840 = vmatpush1.xpose.msra.mxu0 0.0
        %841 = vmatprep.subr.mxu0 0.0
        %842 = vmatpush1.xpose.msra.mxu0 0.0
        %843 = vmatprep.subr.mxu0 0.0
        %844 = vmatpush1.xpose.msra.mxu0 0.0
        %845 = vmatprep.mubr.f32.mxu0 0.0
        %846 = vmatmul.mubr.f32.gmra.mrb[0].mxu0 %v776
        %v847 = vpop.f32.mrb[0].mxu0
        %v848 = vadd.f32 0.0, %v847
        %v849 = vpop.f32.mrb[0].mxu0
        %850 = vdwg.mxu0
        %v851 = vld [vmem:[#allocation3] sm:$0xff]
        %vm852 = vcmask 64512
        %v853 = vsel %vm852, %v848, -inf
        %854 = vmax.xlane.f32.xlu0 %v853
        %v855 = vpop.xlane.xlu0 %854
        %v856 = vmax.f32 %v851, %v855
        %v857 = vsub.f32 %v851, %v856
        %v858 = vmul.f32 %v857, 1.442695
        %v859 = vpow.pop %v858
        %861 = vset.pattern.permute.xlu0 0
        %862 = vperm.xlu0 %861, %v856
        %v863 = vpop.permute.xlu0 %862
        %v865 = vsub.f32 %v848, %v863
        %v866 = vmul.f32 %v865, 1.442695
        %v867 = vpow.pop %v866
        %v868 = vld [vmem:[#allocation4] sm:$0xff]
        %v869 = vmul.f32 %v859, %v868
        %v870 = vsel %vm852, %v867, 0.0
        %871 = vadd.xlane.f32.xlu0 %v870
        %v872 = vpop.xlane.xlu0 %871
        %v873 = vadd.f32 %v869, %v872
        %vm874 = vcmask 7168
        %875 = vst.msk [vmem:[#allocation4] sm:$0xff] %vm874, %v873
        %v876 = vld [vmem:[#allocation5] sm:$0xff]
        %878 = vset.pattern.permute.xlu0 0
        %879 = vperm.xlu0 %878, %v859
        %v880 = vpop.permute.xlu0 %879
        %v882 = vmul.f32 %v880, %v876
        %v884 = vsel %vm852, %v867, 0
        %886 = vmatprep.subr.mxu0 0.0
        %887 = vmatpush1.msra.mxu0 %v771
        %888 = vmatprep.subr.mxu0 0.0
        %889 = vmatpush1.msra.mxu0 0.0
        %890 = vmatprep.subr.mxu0 0.0
        %891 = vmatpush1.msra.mxu0 0.0
        %892 = vmatprep.subr.mxu0 0.0
        %893 = vmatpush1.msra.mxu0 0.0
        %894 = vmatprep.subr.mxu0 0.0
        %895 = vmatpush1.msra.mxu0 0.0
        %896 = vmatprep.subr.mxu0 0.0
        %897 = vmatpush1.msra.mxu0 0.0
        %898 = vmatprep.subr.mxu0 0.0
        %899 = vmatpush1.msra.mxu0 0.0
        %900 = vmatprep.subr.mxu0 0.0
        %901 = vmatpush1.msra.mxu0 0.0
        %902 = vmatprep.subr.mxu0 0.0
        %903 = vmatpush1.msra.mxu0 0.0
        %904 = vmatprep.subr.mxu0 0.0
        %905 = vmatpush1.msra.mxu0 0.0
        %906 = vmatprep.subr.mxu0 0.0
        %907 = vmatpush1.msra.mxu0 0.0
        %908 = vmatprep.subr.mxu0 0.0
        %909 = vmatpush1.msra.mxu0 0.0
        %910 = vmatprep.subr.mxu0 0.0
        %911 = vmatpush1.msra.mxu0 0.0
        %912 = vmatprep.subr.mxu0 0.0
        %913 = vmatpush1.msra.mxu0 0.0
        %914 = vmatprep.subr.mxu0 0.0
        %915 = vmatpush1.msra.mxu0 0.0
        %916 = vmatprep.subr.mxu0 0.0
        %917 = vmatpush1.msra.mxu0 0.0
        %918 = vmatprep.subr.mxu0 0.0
        %919 = vmatpush1.msra.mxu0 0.0
        %920 = vmatprep.subr.mxu0 0.0
        %921 = vmatpush1.msra.mxu0 0.0
        %922 = vmatprep.subr.mxu0 0.0
        %923 = vmatpush1.msra.mxu0 0.0
        %924 = vmatprep.subr.mxu0 0.0
        %925 = vmatpush1.msra.mxu0 0.0
        %926 = vmatprep.subr.mxu0 0.0
        %927 = vmatpush1.msra.mxu0 0.0
        %928 = vmatprep.subr.mxu0 0.0
        %929 = vmatpush1.msra.mxu0 0.0
        %930 = vmatprep.subr.mxu0 0.0
        %931 = vmatpush1.msra.mxu0 0.0
        %932 = vmatprep.subr.mxu0 0.0
        %933 = vmatpush1.msra.mxu0 0.0
        %934 = vmatprep.subr.mxu0 0.0
        %935 = vmatpush1.msra.mxu0 0.0
        %936 = vmatprep.subr.mxu0 0.0
        %937 = vmatpush1.msra.mxu0 0.0
        %938 = vmatprep.subr.mxu0 0.0
        %939 = vmatpush1.msra.mxu0 0.0
        %940 = vmatprep.subr.mxu0 0.0
        %941 = vmatpush1.msra.mxu0 0.0
        %942 = vmatprep.subr.mxu0 0.0
        %943 = vmatpush1.msra.mxu0 0.0
        %944 = vmatprep.subr.mxu0 0.0
        %945 = vmatpush1.msra.mxu0 0.0
        %946 = vmatprep.subr.mxu0 0.0
        %947 = vmatpush1.msra.mxu0 0.0
        %948 = vmatprep.subr.mxu0 0.0
        %949 = vmatpush1.msra.mxu0 0.0
        %950 = vmatprep.mubr.f32.mxu0 0.0
        %951 = vmatmul.mubr.f32.gmra.mrb[0].mxu0 %v884
        %v952 = vpop.f32.mrb[0].mxu0
        %v953 = vadd.f32 0.0, %v952
        %v954 = vpop.f32.mrb[0].mxu0
        %955 = vdwg.mxu0
        %v956 = vadd.f32 %v882, %v953
        %957 = vst.msk [vmem:[#allocation5] sm:$0xff] %vm621, %v956
        %958 = vst.msk [vmem:[#allocation3] sm:$0xff] %vm874, %v856
        %s959 = scalar_lea.vmem [#allocation12], 16
        %v960 = vld [vmem:[%s959] sm:$0xff]
        %v961 = vld [vmem:[%s959 + $0x8] sm:$0xff]
        %s962 = scalar_lea.vmem %s5, 1
        %v963 = vld [vmem:[%s962] sm:$0x1]
        %v965 = vlaneseq
        %v966 = vshrl.u32 %v965, 7
        %v967 = vsub.s32 0, %v966
        %v968 = vrot.slane %v963, %v967
        %970 = vrot.lane.b32.xlu0 %v611, 112
        %v971 = vpop.permute.xlu0 %970
        %v972 = vsel %vm621, %v971, 0
        %974 = vmatprep.subr.mxu0 0.0
        %975 = vmatpush1.msra.mxu0 %v960
        %976 = vmatprep.subr.mxu0 0.0
        %977 = vmatpush1.msra.mxu0 %v961
        %978 = vmatprep.subr.mxu0 0.0
        %979 = vmatpush1.msra.mxu0 0.0
        %980 = vmatprep.subr.mxu0 0.0
        %981 = vmatpush1.msra.mxu0 0.0
        %982 = vmatprep.subr.mxu0 0.0
        %983 = vmatpush1.msra.mxu0 0.0
        %984 = vmatprep.subr.mxu0 0.0
        %985 = vmatpush1.msra.mxu0 0.0
        %986 = vmatprep.subr.mxu0 0.0
        %987 = vmatpush1.msra.mxu0 0.0
        %988 = vmatprep.subr.mxu0 0.0
        %989 = vmatpush1.msra.mxu0 0.0
        %990 = vmatprep.subr.mxu0 0.0
        %991 = vmatpush1.msra.mxu0 0.0
        %992 = vmatprep.subr.mxu0 0.0
        %993 = vmatpush1.msra.mxu0 0.0
        %994 = vmatprep.subr.mxu0 0.0
        %995 = vmatpush1.msra.mxu0 0.0
        %996 = vmatprep.subr.mxu0 0.0
        %997 = vmatpush1.msra.mxu0 0.0
        %998 = vmatprep.subr.mxu0 0.0
        %999 = vmatpush1.msra.mxu0 0.0
        %1000 = vmatprep.subr.mxu0 0.0
        %1001 = vmatpush1.msra.mxu0 0.0
        %1002 = vmatprep.subr.mxu0 0.0
        %1003 = vmatpush1.msra.mxu0 0.0
        %1004 = vmatprep.subr.mxu0 0.0
        %1005 = vmatpush1.msra.mxu0 0.0
        %1006 = vmatprep.subr.mxu0 0.0
        %1007 = vmatpush1.msra.mxu0 0.0
        %1008 = vmatprep.subr.mxu0 0.0
        %1009 = vmatpush1.msra.mxu0 0.0
        %1010 = vmatprep.subr.mxu0 0.0
        %1011 = vmatpush1.msra.mxu0 0.0
        %1012 = vmatprep.subr.mxu0 0.0
        %1013 = vmatpush1.msra.mxu0 0.0
        %1014 = vmatprep.subr.mxu0 0.0
        %1015 = vmatpush1.msra.mxu0 0.0
        %1016 = vmatprep.subr.mxu0 0.0
        %1017 = vmatpush1.msra.mxu0 0.0
        %1018 = vmatprep.subr.mxu0 0.0
        %1019 = vmatpush1.msra.mxu0 0.0
        %1020 = vmatprep.subr.mxu0 0.0
        %1021 = vmatpush1.msra.mxu0 0.0
        %1022 = vmatprep.subr.mxu0 0.0
        %1023 = vmatpush1.msra.mxu0 0.0
        %1024 = vmatprep.subr.mxu0 0.0
        %1025 = vmatpush1.msra.mxu0 0.0
        %1026 = vmatprep.subr.mxu0 0.0
        %1027 = vmatpush1.msra.mxu0 0.0
        %1028 = vmatprep.subr.mxu0 0.0
        %1029 = vmatpush1.msra.mxu0 0.0
        %1030 = vmatprep.subr.mxu0 0.0
        %1031 = vmatpush1.msra.mxu0 0.0
        %1032 = vmatprep.subr.mxu0 0.0
        %1033 = vmatpush1.msra.mxu0 0.0
        %1034 = vmatprep.subr.mxu0 0.0
        %1035 = vmatpush1.msra.mxu0 0.0
        %1036 = vmatprep.subr.mxu0 0.0
        %1037 = vmatpush1.msra.mxu0 0.0
        %1038 = vmatprep.mubr.f32.mxu0 0.0
        %1039 = vmatmul.mubr.f32.gmra.mrb[0].mxu0 %v972
        %v1040 = vpop.f32.mrb[0].mxu0
        %v1041 = vadd.f32 %v968, %v1040
        %v1042 = vpop.f32.mrb[0].mxu0
        %1043 = vdwg.mxu0
        %s1044 = scalar_lea.vmem [#allocation14], 16
        %v1045 = vld [vmem:[%s1044] sm:$0xff]
        %v1046 = vld [vmem:[%s1044 + $0x8] sm:$0xff]
        %s1047 = scalar_lea.vmem %s7, 1
        %v1048 = vld [vmem:[%s1047] sm:$0x1]
        %v1050 = vlaneseq
        %v1051 = vshrl.u32 %v1050, 7
        %v1052 = vsub.s32 0, %v1051
        %v1053 = vrot.slane %v1048, %v1052
        %1055 = vmatprep.subr.mxu0 0.0
        %1056 = vmatpush1.msra.mxu0 %v1045
        %1057 = vmatprep.subr.mxu0 0.0
        %1058 = vmatpush1.msra.mxu0 %v1046
        %1059 = vmatprep.subr.mxu0 0.0
        %1060 = vmatpush1.msra.mxu0 0.0
        %1061 = vmatprep.subr.mxu0 0.0
        %1062 = vmatpush1.msra.mxu0 0.0
        %1063 = vmatprep.subr.mxu0 0.0
        %1064 = vmatpush1.msra.mxu0 0.0
        %1065 = vmatprep.subr.mxu0 0.0
        %1066 = vmatpush1.msra.mxu0 0.0
        %1067 = vmatprep.subr.mxu0 0.0
        %1068 = vmatpush1.msra.mxu0 0.0
        %1069 = vmatprep.subr.mxu0 0.0
        %1070 = vmatpush1.msra.mxu0 0.0
        %1071 = vmatprep.subr.mxu0 0.0
        %1072 = vmatpush1.msra.mxu0 0.0
        %1073 = vmatprep.subr.mxu0 0.0
        %1074 = vmatpush1.msra.mxu0 0.0
        %1075 = vmatprep.subr.mxu0 0.0
        %1076 = vmatpush1.msra.mxu0 0.0
        %1077 = vmatprep.subr.mxu0 0.0
        %1078 = vmatpush1.msra.mxu0 0.0
        %1079 = vmatprep.subr.mxu0 0.0
        %1080 = vmatpush1.msra.mxu0 0.0
        %1081 = vmatprep.subr.mxu0 0.0
        %1082 = vmatpush1.msra.mxu0 0.0
        %1083 = vmatprep.subr.mxu0 0.0
        %1084 = vmatpush1.msra.mxu0 0.0
        %1085 = vmatprep.subr.mxu0 0.0
        %1086 = vmatpush1.msra.mxu0 0.0
        %1087 = vmatprep.subr.mxu0 0.0
        %1088 = vmatpush1.msra.mxu0 0.0
        %1089 = vmatprep.subr.mxu0 0.0
        %1090 = vmatpush1.msra.mxu0 0.0
        %1091 = vmatprep.subr.mxu0 0.0
        %1092 = vmatpush1.msra.mxu0 0.0
        %1093 = vmatprep.subr.mxu0 0.0
        %1094 = vmatpush1.msra.mxu0 0.0
        %1095 = vmatprep.subr.mxu0 0.0
        %1096 = vmatpush1.msra.mxu0 0.0
        %1097 = vmatprep.subr.mxu0 0.0
        %1098 = vmatpush1.msra.mxu0 0.0
        %1099 = vmatprep.subr.mxu0 0.0
        %1100 = vmatpush1.msra.mxu0 0.0
        %1101 = vmatprep.subr.mxu0 0.0
        %1102 = vmatpush1.msra.mxu0 0.0
        %1103 = vmatprep.subr.mxu0 0.0
        %1104 = vmatpush1.msra.mxu0 0.0
        %1105 = vmatprep.subr.mxu0 0.0
        %1106 = vmatpush1.msra.mxu0 0.0
        %1107 = vmatprep.subr.mxu0 0.0
        %1108 = vmatpush1.msra.mxu0 0.0
        %1109 = vmatprep.subr.mxu0 0.0
        %1110 = vmatpush1.msra.mxu0 0.0
        %1111 = vmatprep.subr.mxu0 0.0
        %1112 = vmatpush1.msra.mxu0 0.0
        %1113 = vmatprep.subr.mxu0 0.0
        %1114 = vmatpush1.msra.mxu0 0.0
        %1115 = vmatprep.subr.mxu0 0.0
        %1116 = vmatpush1.msra.mxu0 0.0
        %1117 = vmatprep.subr.mxu0 0.0
        %1118 = vmatpush1.msra.mxu0 0.0
        %1119 = vmatprep.mubr.f32.mxu0 0.0
        %1120 = vmatmul.mubr.f32.gmra.mrb[0].mxu0 %v972
        %v1121 = vpop.f32.mrb[0].mxu0
        %v1122 = vadd.f32 %v1053, %v1121
        %v1123 = vpop.f32.mrb[0].mxu0
        %1124 = vdwg.mxu0
        %s1125 = scalar_lea.vmem [#allocation2], 8
        %v1126 = vld [vmem:[%s1125] sm:$0xff]
        %v1128 = vsel %vm621, %v1126, 0
        %v1131 = vsel %vm621, %v1041, 0
        %1133 = vmatprep.subr.mxu0 0.0
        %1134 = vmatpush1.xpose.msra.mxu0 %v1131
        %1135 = vmatprep.subr.mxu0 0.0
        %1136 = vmatpush1.xpose.msra.mxu0 0.0
        %1137 = vmatprep.subr.mxu0 0.0
        %1138 = vmatpush1.xpose.msra.mxu0 0.0
        %1139 = vmatprep.subr.mxu0 0.0
        %1140 = vmatpush1.xpose.msra.mxu0 0.0
        %1141 = vmatprep.subr.mxu0 0.0
        %1142 = vmatpush1.xpose.msra.mxu0 0.0
        %1143 = vmatprep.subr.mxu0 0.0
        %1144 = vmatpush1.xpose.msra.mxu0 0.0
        %1145 = vmatprep.subr.mxu0 0.0
        %1146 = vmatpush1.xpose.msra.mxu0 0.0
        %1147 = vmatprep.subr.mxu0 0.0
        %1148 = vmatpush1.xpose.msra.mxu0 0.0
        %1149 = vmatprep.subr.mxu0 0.0
        %1150 = vmatpush1.xpose.msra.mxu0 0.0
        %1151 = vmatprep.subr.mxu0 0.0
        %1152 = vmatpush1.xpose.msra.mxu0 0.0
        %1153 = vmatprep.subr.mxu0 0.0
        %1154 = vmatpush1.xpose.msra.mxu0 0.0
        %1155 = vmatprep.subr.mxu0 0.0
        %1156 = vmatpush1.xpose.msra.mxu0 0.0
        %1157 = vmatprep.subr.mxu0 0.0
        %1158 = vmatpush1.xpose.msra.mxu0 0.0
        %1159 = vmatprep.subr.mxu0 0.0
        %1160 = vmatpush1.xpose.msra.mxu0 0.0
        %1161 = vmatprep.subr.mxu0 0.0
        %1162 = vmatpush1.xpose.msra.mxu0 0.0
        %1163 = vmatprep.subr.mxu0 0.0
        %1164 = vmatpush1.xpose.msra.mxu0 0.0
        %1165 = vmatprep.subr.mxu0 0.0
        %1166 = vmatpush1.xpose.msra.mxu0 0.0
        %1167 = vmatprep.subr.mxu0 0.0
        %1168 = vmatpush1.xpose.msra.mxu0 0.0
        %1169 = vmatprep.subr.mxu0 0.0
        %1170 = vmatpush1.xpose.msra.mxu0 0.0
        %1171 = vmatprep.subr.mxu0 0.0
        %1172 = vmatpush1.xpose.msra.mxu0 0.0
        %1173 = vmatprep.subr.mxu0 0.0
        %1174 = vmatpush1.xpose.msra.mxu0 0.0
        %1175 = vmatprep.subr.mxu0 0.0
        %1176 = vmatpush1.xpose.msra.mxu0 0.0
        %1177 = vmatprep.subr.mxu0 0.0
        %1178 = vmatpush1.xpose.msra.mxu0 0.0
        %1179 = vmatprep.subr.mxu0 0.0
        %1180 = vmatpush1.xpose.msra.mxu0 0.0
        %1181 = vmatprep.subr.mxu0 0.0
        %1182 = vmatpush1.xpose.msra.mxu0 0.0
        %1183 = vmatprep.subr.mxu0 0.0
        %1184 = vmatpush1.xpose.msra.mxu0 0.0
        %1185 = vmatprep.subr.mxu0 0.0
        %1186 = vmatpush1.xpose.msra.mxu0 0.0
        %1187 = vmatprep.subr.mxu0 0.0
        %1188 = vmatpush1.xpose.msra.mxu0 0.0
        %1189 = vmatprep.subr.mxu0 0.0
        %1190 = vmatpush1.xpose.msra.mxu0 0.0
        %1191 = vmatprep.subr.mxu0 0.0
        %1192 = vmatpush1.xpose.msra.mxu0 0.0
        %1193 = vmatprep.subr.mxu0 0.0
        %1194 = vmatpush1.xpose.msra.mxu0 0.0
        %1195 = vmatprep.subr.mxu0 0.0
        %1196 = vmatpush1.xpose.msra.mxu0 0.0
        %1197 = vmatprep.mubr.f32.mxu0 0.0
        %1198 = vmatmul.mubr.f32.gmra.mrb[0].mxu0 %v1128
        %v1199 = vpop.f32.mrb[0].mxu0
        %v1200 = vadd.f32 0.0, %v1199
        %v1201 = vpop.f32.mrb[0].mxu0
        %1202 = vdwg.mxu0
        %s1203 = scalar_lea.vmem [#allocation3], 8
        %v1204 = vld [vmem:[%s1203] sm:$0xff]
        %v1205 = vsel %vm852, %v1200, -inf
        %1206 = vmax.xlane.f32.xlu0 %v1205
        %v1207 = vpop.xlane.xlu0 %1206
        %v1208 = vmax.f32 %v1204, %v1207
        %v1209 = vsub.f32 %v1204, %v1208
        %v1210 = vmul.f32 %v1209, 1.442695
        %v1211 = vpow.pop %v1210
        %1213 = vset.pattern.permute.xlu0 0
        %1214 = vperm.xlu0 %1213, %v1208
        %v1215 = vpop.permute.xlu0 %1214
        %v1217 = vsub.f32 %v1200, %v1215
        %v1218 = vmul.f32 %v1217, 1.442695
        %v1219 = vpow.pop %v1218
        %s1220 = scalar_lea.vmem [#allocation4], 8
        %v1221 = vld [vmem:[%s1220] sm:$0xff]
        %v1222 = vmul.f32 %v1211, %v1221
        %v1223 = vsel %vm852, %v1219, 0.0
        %1224 = vadd.xlane.f32.xlu0 %v1223
        %v1225 = vpop.xlane.xlu0 %1224
        %v1226 = vadd.f32 %v1222, %v1225
        %1227 = vst.msk [vmem:[%s1220] sm:$0xff] %vm874, %v1226
        %s1228 = scalar_lea.vmem [#allocation5], 8
        %v1229 = vld [vmem:[%s1228] sm:$0xff]
        %1231 = vset.pattern.permute.xlu0 0
        %1232 = vperm.xlu0 %1231, %v1211
        %v1233 = vpop.permute.xlu0 %1232
        %v1235 = vmul.f32 %v1233, %v1229
        %v1237 = vsel %vm852, %v1219, 0
        %1239 = vmatprep.subr.mxu0 0.0
        %1240 = vmatpush1.msra.mxu0 %v1122
        %1241 = vmatprep.subr.mxu0 0.0
        %1242 = vmatpush1.msra.mxu0 0.0
        %1243 = vmatprep.subr.mxu0 0.0
        %1244 = vmatpush1.msra.mxu0 0.0
        %1245 = vmatprep.subr.mxu0 0.0
        %1246 = vmatpush1.msra.mxu0 0.0
        %1247 = vmatprep.subr.mxu0 0.0
        %1248 = vmatpush1.msra.mxu0 0.0
        %1249 = vmatprep.subr.mxu0 0.0
        %1250 = vmatpush1.msra.mxu0 0.0
        %1251 = vmatprep.subr.mxu0 0.0
        %1252 = vmatpush1.msra.mxu0 0.0
        %1253 = vmatprep.subr.mxu0 0.0
        %1254 = vmatpush1.msra.mxu0 0.0
        %1255 = vmatprep.subr.mxu0 0.0
        %1256 = vmatpush1.msra.mxu0 0.0
        %1257 = vmatprep.subr.mxu0 0.0
        %1258 = vmatpush1.msra.mxu0 0.0
        %1259 = vmatprep.subr.mxu0 0.0
        %1260 = vmatpush1.msra.mxu0 0.0
        %1261 = vmatprep.subr.mxu0 0.0
        %1262 = vmatpush1.msra.mxu0 0.0
        %1263 = vmatprep.subr.mxu0 0.0
        %1264 = vmatpush1.msra.mxu0 0.0
        %1265 = vmatprep.subr.mxu0 0.0
        %1266 = vmatpush1.msra.mxu0 0.0
        %1267 = vmatprep.subr.mxu0 0.0
        %1268 = vmatpush1.msra.mxu0 0.0
        %1269 = vmatprep.subr.mxu0 0.0
        %1270 = vmatpush1.msra.mxu0 0.0
        %1271 = vmatprep.subr.mxu0 0.0
        %1272 = vmatpush1.msra.mxu0 0.0
        %1273 = vmatprep.subr.mxu0 0.0
        %1274 = vmatpush1.msra.mxu0 0.0
        %1275 = vmatprep.subr.mxu0 0.0
        %1276 = vmatpush1.msra.mxu0 0.0
        %1277 = vmatprep.subr.mxu0 0.0
        %1278 = vmatpush1.msra.mxu0 0.0
        %1279 = vmatprep.subr.mxu0 0.0
        %1280 = vmatpush1.msra.mxu0 0.0
        %1281 = vmatprep.subr.mxu0 0.0
        %1282 = vmatpush1.msra.mxu0 0.0
        %1283 = vmatprep.subr.mxu0 0.0
        %1284 = vmatpush1.msra.mxu0 0.0
        %1285 = vmatprep.subr.mxu0 0.0
        %1286 = vmatpush1.msra.mxu0 0.0
        %1287 = vmatprep.subr.mxu0 0.0
        %1288 = vmatpush1.msra.mxu0 0.0
        %1289 = vmatprep.subr.mxu0 0.0
        %1290 = vmatpush1.msra.mxu0 0.0
        %1291 = vmatprep.subr.mxu0 0.0
        %1292 = vmatpush1.msra.mxu0 0.0
        %1293 = vmatprep.subr.mxu0 0.0
        %1294 = vmatpush1.msra.mxu0 0.0
        %1295 = vmatprep.subr.mxu0 0.0
        %1296 = vmatpush1.msra.mxu0 0.0
        %1297 = vmatprep.subr.mxu0 0.0
        %1298 = vmatpush1.msra.mxu0 0.0
        %1299 = vmatprep.subr.mxu0 0.0
        %1300 = vmatpush1.msra.mxu0 0.0
        %1301 = vmatprep.subr.mxu0 0.0
        %1302 = vmatpush1.msra.mxu0 0.0
        %1303 = vmatprep.mubr.f32.mxu0 0.0
        %1304 = vmatmul.mubr.f32.gmra.mrb[0].mxu0 %v1237
        %v1305 = vpop.f32.mrb[0].mxu0
        %v1306 = vadd.f32 0.0, %v1305
        %v1307 = vpop.f32.mrb[0].mxu0
        %1308 = vdwg.mxu0
        %v1309 = vadd.f32 %v1235, %v1306
        %1310 = vst.msk [vmem:[%s1228] sm:$0xff] %vm621, %v1309
        %1311 = vst.msk [vmem:[%s1203] sm:$0xff] %vm874, %v1208
        // Predicated region
        $region77: #{tpu_custom_call.1} parent=51 // pred_check
          %p1312 = pneg %p428
        $region78: #{tpu_custom_call.1} parent=51 // pred_check_branch
          %1314 = sbr.rel (%p1312) target = $region80
        $region79: #{tpu_custom_call.1} parent=51 // pred_region
          %v1315 = vld [vmem:[#allocation4] sm:$0xff]
          %v1316 = vrcp.pop %v1315
          %v1317 = vld [vmem:[#allocation5] sm:$0xff]
          %1319 = vset.pattern.permute.xlu0 0
          %1320 = vperm.xlu0 %1319, %v1316
          %v1321 = vpop.permute.xlu0 %1320
          %v1323 = vmul.f32 %v1317, %v1321
          %1324 = vst.msk [vmem:[%s427] sm:$0xff] %vm621, %v1323
          %v1325 = vld [vmem:[%s1220] sm:$0xff]
          %v1326 = vrcp.pop %v1325
          %v1327 = vld [vmem:[%s1228] sm:$0xff]
          %1329 = vset.pattern.permute.xlu0 0
          %1330 = vperm.xlu0 %1329, %v1326
          %v1331 = vpop.permute.xlu0 %1330
          %v1333 = vmul.f32 %v1327, %v1331
          %1335 = vrot.lane.b32.xlu0 %v1333, 16
          %v1336 = vpop.permute.xlu0 %1335
          %vm1338 = vcmask 261248
          %1339 = vst.msk [vmem:[%s427] sm:$0xff] %vm1338, %v1336
        $region80: #{tpu_custom_call.1} parent=51 // pred_fallthru
          _
        %s1340 = sand.u32 %s240, 1
        %s1341 = scalar_lea.sflag [#allocation8], %s1340
        %s1342 = sand.u32 %s240, 1
        %s1343 = smul.addr %s1342, 8
        %s1344 = scalar_lea.vmem [#allocation15], %s1343
        // Predicated region
        $region81: #{tpu_custom_call.1} parent=51 // pred_check
          %p1345 = pneg %p250
        $region82: #{tpu_custom_call.1} parent=51 // pred_check_branch
          %1347 = sbr.rel (%p1345) target = $region84
        $region83: #{tpu_custom_call.1} parent=51 // pred_region
          %s1349 = ssub.s32 128, 128
          %1350 = vsyncadd %s1341, %s1349
          %s1351 = sadd.s32 %s35, %s34
          %s1352 = smul.addr %s1351, 128
          %s1353 = scalar_lea.hbm %s8, %s1352
          %s1355 = sshll.u32 %s1344, 4
          %s1356 = int_to_ptr.vmem [resolvable:$true] %s1355
          %1358 = dma.vmem_to_hbm [thread:$0]  %s1356, 128, %s1353, %s1341
        $region84: #{tpu_custom_call.1} parent=51 // pred_fallthru
          _
      $region52: #{tpu_custom_call.1} parent=5 // pred_fallthru
        _
      %p1359 = scmp.le.s32.totalorder 2, %s24
      // Predicated region
      $region85: #{tpu_custom_call.1} parent=5 // pred_check
        %p1360 = pneg %p1359
      $region86: #{tpu_custom_call.1} parent=5 // pred_check_branch
        %1362 = sbr.rel (%p1360) target = $region88
      $region87: #{tpu_custom_call.1} parent=5 // pred_region
        %s1363 = ssub.s32 %s24, 2
        // Predicated region
        $region89: #{tpu_custom_call.1} parent=87 // pred_check
          %p1364 = pneg %p256
        $region90: #{tpu_custom_call.1} parent=87 // pred_check_branch
          %1366 = sbr.rel (%p1364) target = $region92
        $region91: #{tpu_custom_call.1} parent=87 // pred_region
          %s1367 = sand.u32 %s241, 1
          %s1368 = scalar_lea.sflag [#allocation8], %s1367
          %s1369 = sand.u32 %s241, 1
          %s1370 = smul.addr %s1369, 8
          %s1371 = scalar_lea.vmem [#allocation15], %s1370
          %1372 = dma.done %s1368, 128
        $region92: #{tpu_custom_call.1} parent=87 // pred_fallthru
          _
      $region88: #{tpu_custom_call.1} parent=5 // pred_fallthru
        _
    $region6: #{tpu_custom_call.1} parent=1 // loop_footer
      %s28 = sadd.s32 1, %s24
    $region7: #{tpu_custom_call.1} parent=1 // loop_footer_branch
      %23 = sbr.rel target = $region3
    $region8: #{tpu_custom_call.1} parent=1 // loop_exit
      _
    %1373 = vsyncpa [#allocation7], 1
    %s1374 = scalar_lea.sflag [#allocation7], 1
    %1375 = vsyncpa %s1374, 1
    %1376 = vsyncpa [#allocation10], 1
    %s1377 = scalar_lea.sflag [#allocation10], 1
    %1378 = vsyncpa %s1377, 1
    %1379 = vsyncpa [#allocation13], 1
    %1380 = vsyncpa [#allocation8], 1
    %s1381 = scalar_lea.sflag [#allocation8], 1
    %1382 = vsyncpa %s1381, 1

</llo_original>
